<compile_context>
chip_gen: v6e
topology: v6e:2x2x1
jax: 0.10.0
libtpu: 0.0.40
codegen_flags: <defaults>
</compile_context>

<pallas_src>
import jax
import jax.numpy as jnp
from jax import lax
from jax.experimental import pallas as pl
from jax.experimental.pallas import tpu as pltpu

EPS = 1e-5


# ------------------------------ Pallas wrapper ----------------------------- #
def bottleneck_pallas(x, kp):
    """x: (N, H, W, Cin) float32 NHWC."""
    N, H, W, Cin = x.shape
    WCin = W * Cin
    WCmid = kp["w1b"].shape[1]          # W * planes      (16*12 = 192)
    WCb = kp["w3b"].shape[0]            # W * basic_out   (16*4  = 64)
    inv_hw = 1.0 / float(H * W)

    def kernel(x_ref, w1b_ref, w2b_ref, w3b_ref, sm_ref, o_ref, ypad_ref):
        # x_ref/o_ref : (1, H, W*Cin) lane-dense f32 slabs (768 lanes -> unmasked DMA)
        # w1b_ref     : (W*Cin, W*Cmid) bf16, block-diag conv1 (bn1 folded)
        # w2b_ref     : (3, W*Cmid, W*Cb) bf16, per-ky banded BasicModule weights
        #               (channel shuffle, grouped DW, plain 3x3, both BNs and the
        #                1x1 shortcut(+BN) all folded in on the host)
        # w3b_ref     : (W*Cb, W*Cin) bf16, block-diag conv3 (bn3 folded)
        # sm_ref      : (8, W*Cin) f32 packed small params (biases + SE weights)
        # ypad_ref    : (H+2, W*Cmid) bf16 vertical zero-pad scratch
        x2d = x_ref[0]                                          # (H, W*Cin) f32

        b1row = sm_ref[0:1, :WCmid]
        b2row = sm_ref[1:2, :WCb]
        b3row = sm_ref[2:3, :]
        wred_rep = sm_ref[3:4, :WCb]
        bred11 = sm_ref[4:5, 0:1]
        wexp_rep = sm_ref[5:6, :WCb]
        bexp_rep = sm_ref[6:7, :WCb]

        # conv1 (block-diag 1x1) + bn1 + relu, stays lane-dense (H, W*Cmid)
        y = jnp.dot(x2d.astype(jnp.bfloat16), w1b_ref[...],
                    preferred_element_type=jnp.float32) + b1row
        y = jnp.maximum(y, 0.0)
        yb = y.astype(jnp.bfloat16)                             # cast ONCE

        # vertical zero padding: border-only zeroing, done EVERY step so the
        # per-core scratch is always fully (re)written under "parallel" grids.
        ypad_ref[0:1, :] = jnp.zeros((1, WCmid), jnp.bfloat16)
        ypad_ref[H + 1:H + 2, :] = jnp.zeros((1, WCmid), jnp.bfloat16)
        ypad_ref[1:H + 1, :] = yb

        # conv2 (BasicModule fused): three row-banded matmuls, f32 accumulation.
        # ky=1 band uses the in-register activations; ky=0/2 read the pad scratch.
        acc = jnp.dot(yb, w2b_ref[1], preferred_element_type=jnp.float32)
        acc = acc + jnp.dot(ypad_ref[0:H, :], w2b_ref[0],
                            preferred_element_type=jnp.float32)
        acc = acc + jnp.dot(ypad_ref[2:H + 2, :], w2b_ref[2],
                            preferred_element_type=jnp.float32)
        s = jnp.maximum(acc + b2row, 0.0)                       # (H, W*Cb) f32

        # SqueezeExcite (reduced_chs == 1):
        #   avg-pool + conv_reduce fuse into one weighted global sum;
        #   conv_expand + hard_sigmoid gate stay in the replicated lane domain.
        t = jnp.sum(s * wred_rep, axis=0, keepdims=True)        # (1, W*Cb)
        rsum = jnp.sum(t, axis=1, keepdims=True) * inv_hw       # (1, 1)
        r = jnp.maximum(rsum + bred11, 0.0)
        gate = jnp.clip(r * wexp_rep + bexp_rep + 3.0, 0.0, 6.0) * (1.0 / 6.0)
        s = s * gate

        # conv3 (block-diag 1x1) + bn3 + residual + relu, lane-dense f32 store
        z = jnp.dot(s.astype(jnp.bfloat16), w3b_ref[...],
                    preferred_element_type=jnp.float32) + b3row
        o_ref[0] = jnp.maximum(z + x2d, 0.0)

    weights = [kp["w1b"], kp["w2b"], kp["w3b"], kp["smalls"]]

    def full(a):
        nd = a.ndim
        return pl.BlockSpec(a.shape, lambda n, _nd=nd: (0,) * _nd)

    x2 = x.reshape(N, H, WCin)

    flops = 2 * N * H * (WCin * WCmid + 3 * WCmid * WCb + WCb * WCin)
    bytes_accessed = (2 * N * H * WCin * 4
                      + sum(int(w.size) * int(w.dtype.itemsize) for w in weights))

    grid_spec = pltpu.PrefetchScalarGridSpec(
        num_scalar_prefetch=0,
        grid=(N,),
        in_specs=[pl.BlockSpec((1, H, WCin), lambda n: (n, 0, 0))]
                 + [full(w) for w in weights],
        out_specs=pl.BlockSpec((1, H, WCin), lambda n: (n, 0, 0)),
        scratch_shapes=[pltpu.VMEM((H + 2, WCmid), jnp.bfloat16)],
    )
    out = pl.pallas_call(
        kernel,
        out_shape=jax.ShapeDtypeStruct((N, H, WCin), jnp.float32),
        grid_spec=grid_spec,
        compiler_params=pltpu.CompilerParams(
            dimension_semantics=("parallel",)),
        cost_estimate=pl.CostEstimate(
            flops=flops, transcendentals=0, bytes_accessed=bytes_accessed),
    )(x2, *weights)
    return out.reshape(N, H, W, Cin)


# --------------------------- parameter construction ------------------------ #
def make_params(key, W, inplanes=48, planes=12, beta=0.35):
    """Deterministic synthetic weights.  Returns (kernel_params, raw_params)."""
    assert inplanes == planes * 4, "residual add requires inplanes == planes*4"
    mid = int(beta * planes)                    # BasicModule output width (4)
    dw_out = int(mid * 0.68)                    # 2
    conv_out = mid - dw_out                     # 2
    times = planes // mid                       # 3
    dw_in = dw_out * times                      # 6
    conv_in = planes - dw_in                    # 6
    groups = dw_out                             # 2
    red = int(mid * 0.25)                       # SE reduced channels (1)
    assert red == 1, "kernel SE path is specialized to reduced_chs == 1"

    keys = iter(jax.random.split(key, 64))

    def nrm(shape, sc=0.1):
        return sc * jax.random.normal(next(keys), shape, jnp.float32)

    def bn_params(c):
        g = 1.0 + nrm((c,))
        b = nrm((c,))
        m = nrm((c,))
        v = 0.5 + jnp.abs(1.0 + nrm((c,)))
        return g, b, m, v

    def fold(g, b, m, v):
        s = g / jnp.sqrt(v + EPS)
        return s, b - m * s

    # raw ("PyTorch-equivalent") weights, in NHWC-friendly layouts
    w1 = nrm((inplanes, planes))                         # conv1 1x1: (Cin, Cmid)
    g1, b1, m1, v1 = bn_params(planes)
    wsc = nrm((planes, mid))                             # shortcut 1x1 on shuffled x
    gsc, bsc, msc, vsc = bn_params(mid)
    wdw = nrm((3, 3, dw_in // groups, dw_out))           # grouped 3x3, HWIO (I per-group)
    gdw, bdw, mdw, vdw = bn_params(dw_out)
    wconv = nrm((3, 3, conv_in, conv_out))               # plain 3x3, HWIO
    gcv, bcv, mcv, vcv = bn_params(conv_out)
    wred = nrm((mid, red))                               # SE conv_reduce (with bias)
    bred = nrm((red,))
    wexp = nrm((red, mid))                               # SE conv_expand (with bias)
    bexp = nrm((mid,))
    w3 = nrm((mid, inplanes))                            # conv3 1x1
    g3, b3, m3, v3 = bn_params(inplanes)

    # channel-shuffle permutation of BasicModule.forward (smallest divisor >= 2)
    factor = next(f for f in range(2, planes + 1) if planes % f == 0)
    # shuffled[..., c'] = y[..., P[c']]
    P = [g * factor + f for f in range(factor) for g in range(planes // factor)]

    # ---- fold BN / shuffle / shortcut into compact dense weights ----
    s1, o1 = fold(g1, b1, m1, v1)
    w1f = w1 * s1[None, :]                               # (Cin, Cmid)
    b1f = o1

    ssc, osc = fold(gsc, bsc, msc, vsc)
    wsc_unshuf = jnp.zeros((planes, mid), jnp.float32).at[jnp.array(P)].set(wsc)
    wsc_f = wsc_unshuf * ssc[None, :]

    # fuse DW (grouped) + Conv branches into one dense 3x3 weight over the
    # UN-shuffled conv1 output channels; outputs [0:dw_out) = DW, rest = Conv
    w33 = jnp.zeros((3, 3, planes, mid), jnp.float32)
    in_per_group = dw_in // groups
    for o in range(dw_out):                    # DW branch, group of output o is o
        for i in range(in_per_group):
            src = P[conv_in + o * in_per_group + i]
            w33 = w33.at[:, :, src, o].set(wdw[:, :, i, o])
    for o in range(conv_out):                  # Conv branch
        for i in range(conv_in):
            src = P[i]
            w33 = w33.at[:, :, src, dw_out + o].set(wconv[:, :, i, o])
    sdw, odw = fold(gdw, bdw, mdw, vdw)
    scv, ocv = fold(gcv, bcv, mcv, vcv)
    s33 = jnp.concatenate([sdw, scv])
    o33 = jnp.concatenate([odw, ocv])
    w33 = w33 * s33[None, None, None, :]
    # fold the BasicModule 1x1 shortcut into the center (1,1) tap — same linear
    # map on the same y, bit-identical algebra.
    w33 = w33.at[1, 1].add(wsc_f)
    b33f = o33 + osc

    s3, o3 = fold(g3, b3, m3, v3)
    w3f = w3 * s3[None, :]                               # (Cb, Cin)
    b3f = o3

    Cin, Cmid, Cb = inplanes, planes, mid

    # ---- kernel-facing layouts: block-diag 1x1s, row-banded 3x3, packed smalls ----
    kp = {}
    eyeW = jnp.eye(W, dtype=jnp.float32)
    kp["w1b"] = jnp.kron(eyeW, w1f).astype(jnp.bfloat16)            # (W*Cin, W*Cmid)

    band = []
    for ky in range(3):
        bk = jnp.zeros((W * Cmid, W * Cb), jnp.float32)
        for kx in range(3):
            # band[wi*Cmid+ci, wo*Cb+co] = w33[ky,kx,ci,co] iff wi == wo + kx - 1
            bk = bk + jnp.kron(jnp.eye(W, k=1 - kx, dtype=jnp.float32),
                               w33[ky, kx])
        band.append(bk)
    kp["w2b"] = jnp.stack(band).astype(jnp.bfloat16)                # (3, W*Cmid, W*Cb)

    kp["w3b"] = jnp.kron(eyeW, w3f).astype(jnp.bfloat16)            # (W*Cb, W*Cin)

    sm = jnp.zeros((8, W * Cin), jnp.float32)
    sm = sm.at[0, :W * Cmid].set(jnp.tile(b1f, W))                  # conv1+bn1 bias
    sm = sm.at[1, :W * Cb].set(jnp.tile(b33f, W))                   # fused conv2 bias
    sm = sm.at[2, :W * Cin].set(jnp.tile(b3f, W))                   # conv3+bn3 bias
    sm = sm.at[3, :W * Cb].set(jnp.tile(wred[:, 0], W))             # SE reduce weight (replicated)
    sm = sm.at[4, 0].set(bred[0])                                   # SE reduce bias (scalar)
    sm = sm.at[5, :W * Cb].set(jnp.tile(wexp[0], W))                # SE expand weight (replicated)
    sm = sm.at[6, :W * Cb].set(jnp.tile(bexp, W))                   # SE expand bias (replicated)
    kp["smalls"] = sm

    rp = dict(w1=w1, g1=g1, b1=b1, m1=m1, v1=v1,
              wsc=wsc, gsc=gsc, bsc=bsc, msc=msc, vsc=vsc,
              wdw=wdw, gdw=gdw, bdw=bdw, mdw=mdw, vdw=vdw,
              wconv=wconv, gcv=gcv, bcv=bcv, mcv=mcv, vcv=vcv,
              wred=wred, bred=bred, wexp=wexp, bexp=bexp,
              w3=w3, g3=g3, b3=b3, m3=m3, v3=v3,
              factor=factor, conv_in=conv_in, groups=groups)
    return kp, rp


# ------------------------- pure-JAX reference (NHWC) ------------------------ #
def bottleneck_reference(x, rp):
    HP = lax.Precision.HIGHEST

    def bn(t, g, b, m, v):
        return (t - m) / jnp.sqrt(v + EPS) * g + b

    y = jax.nn.relu(bn(jnp.einsum("nhwc,cd->nhwd", x, rp["w1"], precision=HP),
                       rp["g1"], rp["b1"], rp["m1"], rp["v1"]))
    N, H, W, C = y.shape
    f = rp["factor"]
    ys = jnp.swapaxes(y.reshape(N, H, W, C // f, f), -1, -2).reshape(N, H, W, C)

    out1 = bn(jnp.einsum("nhwc,cd->nhwd", ys, rp["wsc"], precision=HP),
              rp["gsc"], rp["bsc"], rp["msc"], rp["vsc"])
    ci = rp["conv_in"]
    x1 = lax.conv_general_dilated(ys[..., ci:], rp["wdw"], (1, 1), "SAME",
                                  dimension_numbers=("NHWC", "HWIO", "NHWC"),
                                  feature_group_count=rp["groups"],
                                  precision=HP)
    x1 = bn(x1, rp["gdw"], rp["bdw"], rp["mdw"], rp["vdw"])
    x2 = lax.conv_general_dilated(ys[..., :ci], rp["wconv"], (1, 1), "SAME",
                                  dimension_numbers=("NHWC", "HWIO", "NHWC"),
                                  precision=HP)
    x2 = bn(x2, rp["gcv"], rp["bcv"], rp["mcv"], rp["vcv"])
    s = jax.nn.relu(out1 + jnp.concatenate([x1, x2], axis=-1))

    pooled = jnp.mean(s, axis=(1, 2), keepdims=True)
    r = jax.nn.relu(jnp.einsum("nhwc,co->nhwo", pooled, rp["wred"],
                               precision=HP) + rp["bred"])
    e = jnp.einsum("nhwc,co->nhwo", r, rp["wexp"], precision=HP) + rp["bexp"]
    gate = jnp.clip(e + 3.0, 0.0, 6.0) / 6.0
    s = s * gate

    z = bn(jnp.einsum("nhwc,cd->nhwd", s, rp["w3"], precision=HP),
           rp["g3"], rp["b3"], rp["m3"], rp["v3"])
    return jax.nn.relu(z + x)


# ----------------------------------- main ---------------------------------- #
if __name__ == "__main__":
    N, H, W = 2, 16, 16
    planes = 12
    inplanes = planes * 4        # 48; required so the residual add is valid (downsample=None)

    key = jax.random.PRNGKey(0)
    key_x, key_w = jax.random.split(key)
    x_nchw = jax.random.normal(key_x, (N, inplanes, H, W), jnp.float32)  # PyTorch layout
    x = jnp.transpose(x_nchw, (0, 2, 3, 1))                              # -> NHWC for the kernel

    kp, rp = make_params(key_w, W=W, inplanes=inplanes, planes=planes, beta=0.35)

    out = bottleneck_pallas(x, kp)
    out = jax.block_until_ready(out)

    ref = bottleneck_reference(x, rp)
    err = float(jnp.max(jnp.abs(out - ref)))
    # kernel uses bf16 MXU inputs with f32 accumulation; 1e-2 abs on O(1) outputs
    assert err < 1e-2, f"mismatch vs reference: max abs err = {err}"
    print("KERNEL_OK")
</pallas_src>

<mosaic_0001>
module attributes {stable_mosaic.version = 11 : i64} {
  func.func @kernel(%arg0: i32, %arg1: memref<1x16x768xf32, #tpu.memory_space<vmem>>, %arg2: memref<768x192xbf16, #tpu.memory_space<vmem>>, %arg3: memref<3x192x64xbf16, #tpu.memory_space<vmem>>, %arg4: memref<64x768xbf16, #tpu.memory_space<vmem>>, %arg5: memref<8x768xf32, #tpu.memory_space<vmem>>, %arg6: memref<1x16x768xf32, #tpu.memory_space<vmem>>, %arg7: memref<18x192xbf16, #tpu.memory_space<vmem>>) attributes {dimension_semantics = [#tpu.dimension_semantics<parallel>], iteration_bounds = array<i64: 2>, scalar_prefetch = 0 : i64, scratch_operands = 1 : i64, tpu.core_type = #tpu.core_type<tc>, window_params = [{transform_indices = @transform_0, window_bounds = array<i64: 1, 16, 768>}, {pipeline_mode = #tpu.pipeline_mode<synchronous>, transform_indices = @transform_1, window_bounds = array<i64: 768, 192>}, {pipeline_mode = #tpu.pipeline_mode<synchronous>, transform_indices = @transform_2, window_bounds = array<i64: 3, 192, 64>}, {pipeline_mode = #tpu.pipeline_mode<synchronous>, transform_indices = @transform_3, window_bounds = array<i64: 64, 768>}, {pipeline_mode = #tpu.pipeline_mode<synchronous>, transform_indices = @transform_4, window_bounds = array<i64: 8, 768>}, {transform_indices = @transform_5, window_bounds = array<i64: 1, 16, 768>}]} {
    %c0 = arith.constant 0 : index
    %c0_0 = arith.constant 0 : index
    %c0_1 = arith.constant 0 : index
    %0 = vector.load %arg1[%c0, %c0_0, %c0_1] : memref<1x16x768xf32, #tpu.memory_space<vmem>>, vector<1x16x768xf32>
    %1 = vector.shape_cast %0 : vector<1x16x768xf32> to vector<16x768xf32>
    %c0_2 = arith.constant 0 : index
    %c0_3 = arith.constant 0 : index
    %2 = vector.load %arg5[%c0_2, %c0_3] : memref<8x768xf32, #tpu.memory_space<vmem>>, vector<1x192xf32>
    %c1 = arith.constant 1 : index
    %c0_4 = arith.constant 0 : index
    %3 = vector.load %arg5[%c1, %c0_4] : memref<8x768xf32, #tpu.memory_space<vmem>>, vector<1x64xf32>
    %c2 = arith.constant 2 : index
    %c0_5 = arith.constant 0 : index
    %4 = vector.load %arg5[%c2, %c0_5] : memref<8x768xf32, #tpu.memory_space<vmem>>, vector<1x768xf32>
    %c3 = arith.constant 3 : index
    %c0_6 = arith.constant 0 : index
    %5 = vector.load %arg5[%c3, %c0_6] : memref<8x768xf32, #tpu.memory_space<vmem>>, vector<1x64xf32>
    %c4 = arith.constant 4 : index
    %c0_7 = arith.constant 0 : index
    %6 = vector.load %arg5[%c4, %c0_7] : memref<8x768xf32, #tpu.memory_space<vmem>>, vector<1x1xf32>
    %c5 = arith.constant 5 : index
    %c0_8 = arith.constant 0 : index
    %7 = vector.load %arg5[%c5, %c0_8] : memref<8x768xf32, #tpu.memory_space<vmem>>, vector<1x64xf32>
    %c6 = arith.constant 6 : index
    %c0_9 = arith.constant 0 : index
    %8 = vector.load %arg5[%c6, %c0_9] : memref<8x768xf32, #tpu.memory_space<vmem>>, vector<1x64xf32>
    %9 = arith.truncf %1 : vector<16x768xf32> to vector<16x768xbf16>
    %c0_10 = arith.constant 0 : index
    %c0_11 = arith.constant 0 : index
    %10 = vector.load %arg2[%c0_10, %c0_11] : memref<768x192xbf16, #tpu.memory_space<vmem>>, vector<768x192xbf16>
    %cst = arith.constant dense<0.000000e+00> : vector<16x192xf32>
    %11 = tpu.matmul %9, %10, %cst {dimension_numbers = #tpu.dot_dimension_numbers<[1], [0], [0], [1], [0, 0, 1, 1], [], []>} : vector<16x768xbf16>, vector<768x192xbf16>, vector<16x192xf32> -> vector<16x192xf32>
    %12 = vector.broadcast %2 : vector<1x192xf32> to vector<16x192xf32>
    %13 = arith.addf %11, %12 : vector<16x192xf32>
    %cst_12 = arith.constant 0.000000e+00 : f32
    %14 = vector.broadcast %cst_12 : f32 to vector<16x192xf32>
    %15 = arith.maximumf %13, %14 : vector<16x192xf32>
    %16 = arith.truncf %15 : vector<16x192xf32> to vector<16x192xbf16>
    %cst_13 = arith.constant 0.000000e+00 : bf16
    %17 = vector.broadcast %cst_13 : bf16 to vector<1x192xbf16>
    %c0_14 = arith.constant 0 : index
    %c0_15 = arith.constant 0 : index
    %18 = vector.load %arg7[%c0_14, %c0_15] : memref<18x192xbf16, #tpu.memory_space<vmem>>, vector<1x192xbf16>
    tpu.vector_store %arg7[%c0_14, %c0_15], %17 {strides = array<i32>} : memref<18x192xbf16, #tpu.memory_space<vmem>>, vector<1x192xbf16>,
    %cst_16 = arith.constant 0.000000e+00 : bf16
    %19 = vector.broadcast %cst_16 : bf16 to vector<1x192xbf16>
    %c17 = arith.constant 17 : index
    %c0_17 = arith.constant 0 : index
    %20 = vector.load %arg7[%c17, %c0_17] : memref<18x192xbf16, #tpu.memory_space<vmem>>, vector<1x192xbf16>
    tpu.vector_store %arg7[%c17, %c0_17], %19 {strides = array<i32>} : memref<18x192xbf16, #tpu.memory_space<vmem>>, vector<1x192xbf16>,
    %c1_18 = arith.constant 1 : index
    %c0_19 = arith.constant 0 : index
    %21 = vector.load %arg7[%c1_18, %c0_19] : memref<18x192xbf16, #tpu.memory_space<vmem>>, vector<16x192xbf16>
    tpu.vector_store %arg7[%c1_18, %c0_19], %16 {strides = array<i32>} : memref<18x192xbf16, #tpu.memory_space<vmem>>, vector<16x192xbf16>,
    %c1_20 = arith.constant 1 : index
    %c0_21 = arith.constant 0 : index
    %c0_22 = arith.constant 0 : index
    %22 = vector.load %arg3[%c1_20, %c0_21, %c0_22] : memref<3x192x64xbf16, #tpu.memory_space<vmem>>, vector<1x192x64xbf16>
    %23 = vector.shape_cast %22 : vector<1x192x64xbf16> to vector<192x64xbf16>
    %cst_23 = arith.constant dense<0.000000e+00> : vector<16x64xf32>
    %24 = tpu.matmul %16, %23, %cst_23 {dimension_numbers = #tpu.dot_dimension_numbers<[1], [0], [0], [1], [0, 0, 1, 1], [], []>} : vector<16x192xbf16>, vector<192x64xbf16>, vector<16x64xf32> -> vector<16x64xf32>
    %c0_24 = arith.constant 0 : index
    %c0_25 = arith.constant 0 : index
    %25 = vector.load %arg7[%c0_24, %c0_25] : memref<18x192xbf16, #tpu.memory_space<vmem>>, vector<16x192xbf16>
    %c0_26 = arith.constant 0 : index
    %c0_27 = arith.constant 0 : index
    %c0_28 = arith.constant 0 : index
    %26 = vector.load %arg3[%c0_26, %c0_27, %c0_28] : memref<3x192x64xbf16, #tpu.memory_space<vmem>>, vector<1x192x64xbf16>
    %27 = vector.shape_cast %26 : vector<1x192x64xbf16> to vector<192x64xbf16>
    %cst_29 = arith.constant dense<0.000000e+00> : vector<16x64xf32>
    %28 = tpu.matmul %25, %27, %cst_29 {dimension_numbers = #tpu.dot_dimension_numbers<[1], [0], [0], [1], [0, 0, 1, 1], [], []>} : vector<16x192xbf16>, vector<192x64xbf16>, vector<16x64xf32> -> vector<16x64xf32>
    %29 = arith.addf %24, %28 : vector<16x64xf32>
    %c2_30 = arith.constant 2 : index
    %c0_31 = arith.constant 0 : index
    %30 = vector.load %arg7[%c2_30, %c0_31] : memref<18x192xbf16, #tpu.memory_space<vmem>>, vector<16x192xbf16>
    %c2_32 = arith.constant 2 : index
    %c0_33 = arith.constant 0 : index
    %c0_34 = arith.constant 0 : index
    %31 = vector.load %arg3[%c2_32, %c0_33, %c0_34] : memref<3x192x64xbf16, #tpu.memory_space<vmem>>, vector<1x192x64xbf16>
    %32 = vector.shape_cast %31 : vector<1x192x64xbf16> to vector<192x64xbf16>
    %cst_35 = arith.constant dense<0.000000e+00> : vector<16x64xf32>
    %33 = tpu.matmul %30, %32, %cst_35 {dimension_numbers = #tpu.dot_dimension_numbers<[1], [0], [0], [1], [0, 0, 1, 1], [], []>} : vector<16x192xbf16>, vector<192x64xbf16>, vector<16x64xf32> -> vector<16x64xf32>
    %34 = arith.addf %29, %33 : vector<16x64xf32>
    %35 = vector.broadcast %3 : vector<1x64xf32> to vector<16x64xf32>
    %36 = arith.addf %34, %35 : vector<16x64xf32>
    %cst_36 = arith.constant 0.000000e+00 : f32
    %37 = vector.broadcast %cst_36 : f32 to vector<16x64xf32>
    %38 = arith.maximumf %36, %37 : vector<16x64xf32>
    %39 = vector.broadcast %5 : vector<1x64xf32> to vector<16x64xf32>
    %40 = arith.mulf %38, %39 : vector<16x64xf32>
    %cst_37 = arith.constant dense<0.000000e+00> : vector<64xf32>
    %41 = vector.multi_reduction <add>, %40, %cst_37 [0] : vector<16x64xf32> to vector<64xf32>
    %42 = vector.shape_cast %41 : vector<64xf32> to vector<1x64xf32>
    %cst_38 = arith.constant dense<0.000000e+00> : vector<1xf32>
    %43 = vector.multi_reduction <add>, %42, %cst_38 [1] : vector<1x64xf32> to vector<1xf32>
    %44 = vector.shape_cast %43 : vector<1xf32> to vector<1x1xf32>
    %cst_39 = arith.constant 3.906250e-03 : f32
    %45 = vector.broadcast %cst_39 : f32 to vector<1x1xf32>
    %46 = arith.mulf %44, %45 : vector<1x1xf32>
    %47 = arith.addf %46, %6 : vector<1x1xf32>
    %cst_40 = arith.constant 0.000000e+00 : f32
    %48 = vector.broadcast %cst_40 : f32 to vector<1x1xf32>
    %49 = arith.maximumf %47, %48 : vector<1x1xf32>
    %50 = vector.broadcast %49 : vector<1x1xf32> to vector<1x64xf32>
    %51 = arith.mulf %50, %7 : vector<1x64xf32>
    %52 = arith.addf %51, %8 : vector<1x64xf32>
    %cst_41 = arith.constant 3.000000e+00 : f32
    %53 = vector.broadcast %cst_41 : f32 to vector<1x64xf32>
    %54 = arith.addf %52, %53 : vector<1x64xf32>
    %cst_42 = arith.constant 0.000000e+00 : f32
    %cst_43 = arith.constant 6.000000e+00 : f32
    %55 = vector.broadcast %cst_42 : f32 to vector<1x64xf32>
    %56 = arith.maximumf %55, %54 : vector<1x64xf32>
    %57 = vector.broadcast %cst_43 : f32 to vector<1x64xf32>
    %58 = arith.minimumf %57, %56 : vector<1x64xf32>
    %cst_44 = arith.constant 0.166666672 : f32
    %59 = vector.broadcast %cst_44 : f32 to vector<1x64xf32>
    %60 = arith.mulf %58, %59 : vector<1x64xf32>
    %61 = vector.broadcast %60 : vector<1x64xf32> to vector<16x64xf32>
    %62 = arith.mulf %38, %61 : vector<16x64xf32>
    %63 = arith.truncf %62 : vector<16x64xf32> to vector<16x64xbf16>
    %c0_45 = arith.constant 0 : index
    %c0_46 = arith.constant 0 : index
    %64 = vector.load %arg4[%c0_45, %c0_46] : memref<64x768xbf16, #tpu.memory_space<vmem>>, vector<64x768xbf16>
    %cst_47 = arith.constant dense<0.000000e+00> : vector<16x768xf32>
    %65 = tpu.matmul %63, %64, %cst_47 {dimension_numbers = #tpu.dot_dimension_numbers<[1], [0], [0], [1], [0, 0, 1, 1], [], []>} : vector<16x64xbf16>, vector<64x768xbf16>, vector<16x768xf32> -> vector<16x768xf32>
    %66 = vector.broadcast %4 : vector<1x768xf32> to vector<16x768xf32>
    %67 = arith.addf %65, %66 : vector<16x768xf32>
    %68 = arith.addf %67, %1 : vector<16x768xf32>
    %cst_48 = arith.constant 0.000000e+00 : f32
    %69 = vector.broadcast %cst_48 : f32 to vector<16x768xf32>
    %70 = arith.maximumf %68, %69 : vector<16x768xf32>
    %c0_49 = arith.constant 0 : index
    %c0_50 = arith.constant 0 : index
    %c0_51 = arith.constant 0 : index
    %71 = vector.load %arg6[%c0_49, %c0_50, %c0_51] : memref<1x16x768xf32, #tpu.memory_space<vmem>>, vector<1x16x768xf32>
    %72 = vector.shape_cast %71 : vector<1x16x768xf32> to vector<16x768xf32>
    %73 = vector.shape_cast %70 : vector<16x768xf32> to vector<1x16x768xf32>
    tpu.vector_store %arg6[%c0_49, %c0_50, %c0_51], %73 {strides = array<i32>} : memref<1x16x768xf32, #tpu.memory_space<vmem>>, vector<1x16x768xf32>,
    return
  }
  func.func @transform_0(%arg0: i32) -> (i32, i32, i32) {
    %c0_i32 = arith.constant 0 : i32
    %c0_i32_0 = arith.constant 0 : i32
    %c0_i32_1 = arith.constant 0 : i32
    return %arg0, %c0_i32, %c0_i32_0 : i32, i32, i32
  }
  func.func @transform_1(%arg0: i32) -> (i32, i32) {
    %c0_i32 = arith.constant 0 : i32
    %c0_i32_0 = arith.constant 0 : i32
    %c0_i32_1 = arith.constant 0 : i32
    return %c0_i32, %c0_i32_0 : i32, i32
  }
  func.func @transform_2(%arg0: i32) -> (i32, i32, i32) {
    %c0_i32 = arith.constant 0 : i32
    %c0_i32_0 = arith.constant 0 : i32
    %c0_i32_1 = arith.constant 0 : i32
    %c0_i32_2 = arith.constant 0 : i32
    return %c0_i32, %c0_i32_0, %c0_i32_1 : i32, i32, i32
  }
  func.func @transform_3(%arg0: i32) -> (i32, i32) {
    %c0_i32 = arith.constant 0 : i32
    %c0_i32_0 = arith.constant 0 : i32
    %c0_i32_1 = arith.constant 0 : i32
    return %c0_i32, %c0_i32_0 : i32, i32
  }
  func.func @transform_4(%arg0: i32) -> (i32, i32) {
    %c0_i32 = arith.constant 0 : i32
    %c0_i32_0 = arith.constant 0 : i32
    %c0_i32_1 = arith.constant 0 : i32
    return %c0_i32, %c0_i32_0 : i32, i32
  }
  func.func @transform_5(%arg0: i32) -> (i32, i32, i32) {
    %c0_i32 = arith.constant 0 : i32
    %c0_i32_0 = arith.constant 0 : i32
    %c0_i32_1 = arith.constant 0 : i32
    return %arg0, %c0_i32, %c0_i32_0 : i32, i32, i32
  }
}

</mosaic_0001>

<llo_original>
// kernel: tpu_custom_call.1
$region0: #{tpu_custom_call.1}
  #allocation0 [shape = 'u32[]', space=smem, size = 0x4, offset = 0x4, fixed_abs, tag = 'smem constant byte address 0x4 - core index']
  #allocation1 [shape = 'u32[144,128]{1,0:T(1,128)}', space=vmem, size = 0x12000, scoped, tag = 'internal scratch']
  #allocation2 [shape = 'bf16[18,192]{1,0:T(8,128)(2,1)}', space=vmem, size = 0x3000, scoped, tag = 'scratch operand']
  %s0 = inlined_call_operand.vmem [shape: f32[2,16,768], index: 0, kind: input, shape index: {}]
  %s1 = inlined_call_operand.vmem [shape: bf16[768,192], index: 1, kind: input, shape index: {}]
  %s2 = inlined_call_operand.vmem [shape: bf16[3,192,64], index: 2, kind: input, shape index: {}]
  %s3 = inlined_call_operand.vmem [shape: bf16[64,768], index: 3, kind: input, shape index: {}]
  %s4 = inlined_call_operand.vmem [shape: f32[8,768], index: 4, kind: input, shape index: {}]
  %s5 = inlined_call_operand.hbm [shape: f32[2,16,768], index: 5, kind: output, shape index: {}]
  %s6 = sld [smem:[#allocation0]]
  $region53: #{tpu_custom_call.1} parent=0
    _
  %s8 = ssub.s32 1, %s6
  %s9 = scalar_select 0, %s8, %s6
  $region1: #{tpu_custom_call.1} parent=0
    #allocation3 [shape = 'u8[98304]{0}', space=vmem, size = 0x18000, scoped, tag = 'output window, operand 0']
    #allocation4 [shape = 's32[2]{0}', space=sflag, size = 0x8, scoped, tag = 'scoped memory for tpu_custom_call.1']
    %10 = vsyncpa [#allocation4], 0
    %s11 = scalar_lea.sflag [#allocation4], 1
    %12 = vsyncpa %s11, 0
    loop: start=0, step=1, limit=4
    $region2: #{tpu_custom_call.1} parent=1 // loop_pre_header
      _
    $region3: #{tpu_custom_call.1} parent=1 // loop_header
      %s14 = sphi 0, %s18
      %p15 = scmp.ge.s32.totalorder %s14, 4
      %s24 = sphi 0, %s26
      %s27 = sphi 0, %s24
      %s28 = sphi 0, %s27
      %s44 = sphi 0, %s28
      %s48 = sphi 0, %s48
      %s50 = sphi 0, %s48
      %s51 = sphi 0, %s50
      %s65 = sphi 0, %s51
      %s69 = sphi 0, %s69
      %s71 = sphi 0, %s69
      %s72 = sphi 0, %s71
      %s86 = sphi 0, %s72
      %s90 = sphi 0, %s90
      %s92 = sphi 0, %s90
      %s93 = sphi 0, %s92
      %s107 = sphi 0, %s93
      %s111 = sphi 0, %s111
      %s113 = sphi 0, %s111
      %s114 = sphi 0, %s113
      %s128 = sphi 0, %s114
      %s134 = sphi 0, %s136
      %s137 = sphi 0, %s134
      %s138 = sphi 0, %s137
      %s154 = sphi 0, %s138
    $region4: #{tpu_custom_call.1} parent=1 // loop_header_branch
      %17 = sbr.rel (%p15) target = $region8
    $region5: #{tpu_custom_call.1} parent=1 // loop_body
      %s19 = ssub.s32 %s14, 1
      %s20 = ssub.s32 %s14, 2
      %s21 = sadd.s32 %s14, 1
      %s22 = ssub.s32 %s14, %s21
      %p23 = scmp.eq.s32.totalorder %s22, 0
      %s25 = sadd.s32 %s24, 1
      %s26 = scalar_select %p23, %s24, %s25
      %p29 = pneg %p23
      %p30 = scmp.eq.s32.totalorder %s14, 1
      %p31 = por %p29, %p30
      %p32 = scmp.ne.s32.totalorder %s24, %s27
      %p33 = scmp.eq.s32.totalorder %s14, 0
      %p34 = por %p32, %p33
      %p35 = scmp.ne.s32.totalorder %s24, %s27
      %p36 = scmp.eq.s32.totalorder %s19, 1
      %p37 = por %p35, %p36
      %p38 = scmp.ne.s32.totalorder %s27, %s28
      %p39 = scmp.eq.s32.totalorder %s19, 0
      %p40 = por %p38, %p39
      %p41 = scmp.ne.s32.totalorder %s27, %s28
      %p42 = scmp.eq.s32.totalorder %s20, 1
      %p43 = por %p41, %p42
      %p45 = scmp.ne.s32.totalorder %s28, %s44
      %p46 = scmp.eq.s32.totalorder %s20, 0
      %p47 = por %p45, %p46
      %s49 = sadd.s32 %s48, 1
      %p52 = scmp.eq.s32.totalorder %s14, 1
      %p53 = scmp.ne.s32.totalorder %s48, %s50
      %p54 = scmp.eq.s32.totalorder %s14, 0
      %p55 = por %p53, %p54
      %p56 = scmp.ne.s32.totalorder %s48, %s50
      %p57 = scmp.eq.s32.totalorder %s19, 1
      %p58 = por %p56, %p57
      %p59 = scmp.ne.s32.totalorder %s50, %s51
      %p60 = scmp.eq.s32.totalorder %s19, 0
      %p61 = por %p59, %p60
      %p62 = scmp.ne.s32.totalorder %s50, %s51
      %p63 = scmp.eq.s32.totalorder %s20, 1
      %p64 = por %p62, %p63
      %p66 = scmp.ne.s32.totalorder %s51, %s65
      %p67 = scmp.eq.s32.totalorder %s20, 0
      %p68 = por %p66, %p67
      %s70 = sadd.s32 %s69, 1
      %p73 = scmp.eq.s32.totalorder %s14, 1
      %p74 = scmp.ne.s32.totalorder %s69, %s71
      %p75 = scmp.eq.s32.totalorder %s14, 0
      %p76 = por %p74, %p75
      %p77 = scmp.ne.s32.totalorder %s69, %s71
      %p78 = scmp.eq.s32.totalorder %s19, 1
      %p79 = por %p77, %p78
      %p80 = scmp.ne.s32.totalorder %s71, %s72
      %p81 = scmp.eq.s32.totalorder %s19, 0
      %p82 = por %p80, %p81
      %p83 = scmp.ne.s32.totalorder %s71, %s72
      %p84 = scmp.eq.s32.totalorder %s20, 1
      %p85 = por %p83, %p84
      %p87 = scmp.ne.s32.totalorder %s72, %s86
      %p88 = scmp.eq.s32.totalorder %s20, 0
      %p89 = por %p87, %p88
      %s91 = sadd.s32 %s90, 1
      %p94 = scmp.eq.s32.totalorder %s14, 1
      %p95 = scmp.ne.s32.totalorder %s90, %s92
      %p96 = scmp.eq.s32.totalorder %s14, 0
      %p97 = por %p95, %p96
      %p98 = scmp.ne.s32.totalorder %s90, %s92
      %p99 = scmp.eq.s32.totalorder %s19, 1
      %p100 = por %p98, %p99
      %p101 = scmp.ne.s32.totalorder %s92, %s93
      %p102 = scmp.eq.s32.totalorder %s19, 0
      %p103 = por %p101, %p102
      %p104 = scmp.ne.s32.totalorder %s92, %s93
      %p105 = scmp.eq.s32.totalorder %s20, 1
      %p106 = por %p104, %p105
      %p108 = scmp.ne.s32.totalorder %s93, %s107
      %p109 = scmp.eq.s32.totalorder %s20, 0
      %p110 = por %p108, %p109
      %s112 = sadd.s32 %s111, 1
      %p115 = scmp.eq.s32.totalorder %s14, 1
      %p116 = scmp.ne.s32.totalorder %s111, %s113
      %p117 = scmp.eq.s32.totalorder %s14, 0
      %p118 = por %p116, %p117
      %p119 = scmp.ne.s32.totalorder %s111, %s113
      %p120 = scmp.eq.s32.totalorder %s19, 1
      %p121 = por %p119, %p120
      %p122 = scmp.ne.s32.totalorder %s113, %s114
      %p123 = scmp.eq.s32.totalorder %s19, 0
      %p124 = por %p122, %p123
      %p125 = scmp.ne.s32.totalorder %s113, %s114
      %p126 = scmp.eq.s32.totalorder %s20, 1
      %p127 = por %p125, %p126
      %p129 = scmp.ne.s32.totalorder %s114, %s128
      %p130 = scmp.eq.s32.totalorder %s20, 0
      %p131 = por %p129, %p130
      %s132 = ssub.s32 %s14, %s21
      %p133 = scmp.eq.s32.totalorder %s132, 0
      %s135 = sadd.s32 %s134, 1
      %s136 = scalar_select %p133, %s134, %s135
      %p139 = pneg %p133
      %p140 = scmp.eq.s32.totalorder %s14, 1
      %p141 = por %p139, %p140
      %p142 = scmp.ne.s32.totalorder %s134, %s137
      %p143 = scmp.eq.s32.totalorder %s14, 0
      %p144 = por %p142, %p143
      %p145 = scmp.ne.s32.totalorder %s134, %s137
      %p146 = scmp.eq.s32.totalorder %s19, 1
      %p147 = por %p145, %p146
      %p148 = scmp.ne.s32.totalorder %s137, %s138
      %p149 = scmp.eq.s32.totalorder %s19, 0
      %p150 = por %p148, %p149
      %p151 = scmp.ne.s32.totalorder %s137, %s138
      %p152 = scmp.eq.s32.totalorder %s20, 1
      %p153 = por %p151, %p152
      %p155 = scmp.ne.s32.totalorder %s138, %s154
      %p156 = scmp.eq.s32.totalorder %s20, 0
      %p157 = por %p155, %p156
      %p158 = scmp.le.s32.totalorder 1, %s14
      %p159 = scmp.lt.s32.totalorder %s14, 3
      %p160 = pnand %p158, %p159
      %p161 = pneg %p160
      // Predicated region
      $region9: #{tpu_custom_call.1} parent=5 // pred_check
        _
      $region10: #{tpu_custom_call.1} parent=5 // pred_check_branch
        %163 = sbr.rel (%p160) target = $region12
      $region11: #{tpu_custom_call.1} parent=5 // pred_region
        %s164 = ssub.s32 %s14, 1
        // Predicated region
        $region13: #{tpu_custom_call.1} parent=11 // pred_check
          %p165 = pneg %p61
        $region14: #{tpu_custom_call.1} parent=11 // pred_check_branch
          %167 = sbr.rel (%p165) target = $region16
        $region15: #{tpu_custom_call.1} parent=11 // pred_region
          _
        $region16: #{tpu_custom_call.1} parent=11 // pred_fallthru
          _
        // Predicated region
        $region17: #{tpu_custom_call.1} parent=11 // pred_check
          %p168 = pneg %p82
        $region18: #{tpu_custom_call.1} parent=11 // pred_check_branch
          %170 = sbr.rel (%p168) target = $region20
        $region19: #{tpu_custom_call.1} parent=11 // pred_region
          _
        $region20: #{tpu_custom_call.1} parent=11 // pred_fallthru
          _
        // Predicated region
        $region21: #{tpu_custom_call.1} parent=11 // pred_check
          %p171 = pneg %p103
        $region22: #{tpu_custom_call.1} parent=11 // pred_check_branch
          %173 = sbr.rel (%p171) target = $region24
        $region23: #{tpu_custom_call.1} parent=11 // pred_region
          _
        $region24: #{tpu_custom_call.1} parent=11 // pred_fallthru
          _
        // Predicated region
        $region25: #{tpu_custom_call.1} parent=11 // pred_check
          %p174 = pneg %p124
        $region26: #{tpu_custom_call.1} parent=11 // pred_check_branch
          %176 = sbr.rel (%p174) target = $region28
        $region27: #{tpu_custom_call.1} parent=11 // pred_region
          _
        $region28: #{tpu_custom_call.1} parent=11 // pred_fallthru
          _
      $region12: #{tpu_custom_call.1} parent=5 // pred_fallthru
        _
      %p177 = scmp.lt.s32.totalorder %s14, 2
      // Predicated region
      $region29: #{tpu_custom_call.1} parent=5 // pred_check
        %p178 = pneg %p177
      $region30: #{tpu_custom_call.1} parent=5 // pred_check_branch
        %180 = sbr.rel (%p178) target = $region32
      $region31: #{tpu_custom_call.1} parent=5 // pred_region
        // Predicated region
        $region33: #{tpu_custom_call.1} parent=31 // pred_check
          %p181 = pneg %p34
        $region34: #{tpu_custom_call.1} parent=31 // pred_check_branch
          %183 = sbr.rel (%p181) target = $region36
        $region35: #{tpu_custom_call.1} parent=31 // pred_region
          %p184 = scmp.lt.s32.totalorder %s14, 1
          %s185 = scalar_select %p184, %s14, 1
          %s186 = smul.addr %s185, 12
          %s187 = smul.addr %s186, 8
          %s188 = scalar_lea.vmem %s0, %s187
        $region36: #{tpu_custom_call.1} parent=31 // pred_fallthru
          _
      $region32: #{tpu_custom_call.1} parent=5 // pred_fallthru
        _
      %p189 = scmp.le.s32.totalorder 1, %s14
      %p190 = scmp.lt.s32.totalorder %s14, 3
      %p191 = pnand %p189, %p190
      %p192 = pneg %p191
      // Predicated region
      $region37: #{tpu_custom_call.1} parent=5 // pred_check
        _
      $region38: #{tpu_custom_call.1} parent=5 // pred_check_branch
        %194 = sbr.rel (%p191) target = $region40
      $region39: #{tpu_custom_call.1} parent=5 // pred_region
        %s195 = ssub.s32 %s14, 1
        %p196 = scmp.lt.s32.totalorder %s19, 1
        %s197 = scalar_select %p196, %s19, 1
        %s198 = smul.addr %s197, 12
        %s199 = smul.addr %s198, 8
        %s200 = scalar_lea.vmem %s0, %s199
        %p201 = pneg %p40
        %p202 = pneg %p37
        %p203 = pneg %p61
        %p204 = pneg %p58
        %p205 = pneg %p82
        %p206 = pneg %p79
        %p207 = pneg %p103
        %p208 = pneg %p100
        %p209 = pneg %p124
        %p210 = pneg %p121
        %p211 = pneg %p150
        %p212 = pneg %p147
        %s213 = sand.u32 %s137, 1
        %s214 = scalar_lea.sflag [#allocation4], %s213
        %s215 = sand.u32 %s137, 1
        %s216 = smul.addr %s215, 96
        %s217 = scalar_lea.vmem [#allocation3], %s216
        %p218 = scmp.lt.s32.totalorder %s19, 1
        %s219 = scalar_select %p218, %s19, 1
        %s220 = smul.addr %s219, 12
        %s221 = smul.addr %s220, 8
        %s222 = scalar_lea.vmem %s0, %s221
        %v224 = vld [vmem:[%s222] sm:$0xff]
        %v225 = vld [vmem:[%s222 + $0x8] sm:$0xff]
        %v226 = vld [vmem:[%s222 + $0x10] sm:$0xff]
        %v227 = vld [vmem:[%s222 + $0x18] sm:$0xff]
        %v228 = vld [vmem:[%s222 + $0x20] sm:$0xff]
        %v229 = vld [vmem:[%s222 + $0x28] sm:$0xff]
        %v230 = vld [vmem:[%s222 + $0x30] sm:$0xff]
        %v231 = vld [vmem:[%s222 + $0x38] sm:$0xff]
        %v232 = vld [vmem:[%s222 + $0x40] sm:$0xff]
        %v233 = vld [vmem:[%s222 + $0x48] sm:$0xff]
        %v234 = vld [vmem:[%s222 + $0x50] sm:$0xff]
        %v235 = vld [vmem:[%s222 + $0x58] sm:$0xff]
        %v236 = vld [vmem:[%s4] ss:$8 sm:$0x3]
        %v237 = vld [vmem:[%s4 + $0x1] ss:$0 sm:$0xff]
        %s238 = scalar_lea.vmem %s4, 2
        %v239 = vld [vmem:[%s238] ss:$8 sm:$0xf]
        %v240 = vld [vmem:[%s238] ss:$8 sm:$0x30]
        %v241 = vor.u32 %v239, %v240
        %v242 = vld [vmem:[%s4 + $0x3] ss:$0 sm:$0xff]
        %v243 = vld [vmem:[%s4 + $0x4] ss:$0 sm:$0xff]
        %v244 = vld [vmem:[%s4 + $0x5] ss:$0 sm:$0xff]
        %v245 = vld [vmem:[%s4 + $0x6] ss:$0 sm:$0xff]
        %v246 = vpack.c.bf16 %v230, %v224
        %v247 = vpack.c.bf16 %v231, %v225
        %v248 = vpack.c.bf16 %v232, %v226
        %v249 = vpack.c.bf16 %v233, %v227
        %v250 = vpack.c.bf16 %v234, %v228
        %v251 = vpack.c.bf16 %v235, %v229
        %v252 = vld [vmem:[%s1] sm:$0xff]
        %v253 = vld [vmem:[%s1 + $0x8] sm:$0xff]
        %v254 = vld [vmem:[%s1 + $0x10] sm:$0xff]
        %v255 = vld [vmem:[%s1 + $0x18] sm:$0xff]
        %v256 = vld [vmem:[%s1 + $0x20] sm:$0xff]
        %v257 = vld [vmem:[%s1 + $0x28] sm:$0xff]
        %v258 = vld [vmem:[%s1 + $0x30] sm:$0xff]
        %v259 = vld [vmem:[%s1 + $0x38] sm:$0xff]
        %v260 = vld [vmem:[%s1 + $0x40] sm:$0xff]
        %v261 = vld [vmem:[%s1 + $0x48] sm:$0xff]
        %v262 = vld [vmem:[%s1 + $0x50] sm:$0xff]
        %v263 = vld [vmem:[%s1 + $0x58] sm:$0xff]
        %v264 = vld [vmem:[%s1 + $0x60] sm:$0xff]
        %v265 = vld [vmem:[%s1 + $0x68] sm:$0xff]
        %v266 = vld [vmem:[%s1 + $0x70] sm:$0xff]
        %v267 = vld [vmem:[%s1 + $0x78] sm:$0xff]
        %v268 = vld [vmem:[%s1 + $0x80] sm:$0xff]
        %v269 = vld [vmem:[%s1 + $0x88] sm:$0xff]
        %v270 = vld [vmem:[%s1 + $0x90] sm:$0xff]
        %v271 = vld [vmem:[%s1 + $0x98] sm:$0xff]
        %v272 = vld [vmem:[%s1 + $0xa0] sm:$0xff]
        %v273 = vld [vmem:[%s1 + $0xa8] sm:$0xff]
        %v274 = vld [vmem:[%s1 + $0xb0] sm:$0xff]
        %v275 = vld [vmem:[%s1 + $0xb8] sm:$0xff]
        %v276 = vld [vmem:[%s1 + $0xc0] sm:$0xff]
        %v277 = vld [vmem:[%s1 + $0xc8] sm:$0xff]
        %v278 = vld [vmem:[%s1 + $0xd0] sm:$0xff]
        %v279 = vld [vmem:[%s1 + $0xd8] sm:$0xff]
        %v280 = vld [vmem:[%s1 + $0xe0] sm:$0xff]
        %v281 = vld [vmem:[%s1 + $0xe8] sm:$0xff]
        %v282 = vld [vmem:[%s1 + $0xf0] sm:$0xff]
        %v283 = vld [vmem:[%s1 + $0xf8] sm:$0xff]
        %v284 = vld [vmem:[%s1 + $0x100] sm:$0xff]
        %v285 = vld [vmem:[%s1 + $0x108] sm:$0xff]
        %v286 = vld [vmem:[%s1 + $0x110] sm:$0xff]
        %v287 = vld [vmem:[%s1 + $0x118] sm:$0xff]
        %v288 = vld [vmem:[%s1 + $0x120] sm:$0xff]
        %v289 = vld [vmem:[%s1 + $0x128] sm:$0xff]
        %v290 = vld [vmem:[%s1 + $0x130] sm:$0xff]
        %v291 = vld [vmem:[%s1 + $0x138] sm:$0xff]
        %v292 = vld [vmem:[%s1 + $0x140] sm:$0xff]
        %v293 = vld [vmem:[%s1 + $0x148] sm:$0xff]
        %v294 = vld [vmem:[%s1 + $0x150] sm:$0xff]
        %v295 = vld [vmem:[%s1 + $0x158] sm:$0xff]
        %v296 = vld [vmem:[%s1 + $0x160] sm:$0xff]
        %v297 = vld [vmem:[%s1 + $0x168] sm:$0xff]
        %v298 = vld [vmem:[%s1 + $0x170] sm:$0xff]
        %v299 = vld [vmem:[%s1 + $0x178] sm:$0xff]
        %v300 = vld [vmem:[%s1 + $0x180] sm:$0xff]
        %v301 = vld [vmem:[%s1 + $0x188] sm:$0xff]
        %v302 = vld [vmem:[%s1 + $0x190] sm:$0xff]
        %v303 = vld [vmem:[%s1 + $0x198] sm:$0xff]
        %v304 = vld [vmem:[%s1 + $0x1a0] sm:$0xff]
        %v305 = vld [vmem:[%s1 + $0x1a8] sm:$0xff]
        %v306 = vld [vmem:[%s1 + $0x1b0] sm:$0xff]
        %v307 = vld [vmem:[%s1 + $0x1b8] sm:$0xff]
        %v308 = vld [vmem:[%s1 + $0x1c0] sm:$0xff]
        %v309 = vld [vmem:[%s1 + $0x1c8] sm:$0xff]
        %v310 = vld [vmem:[%s1 + $0x1d0] sm:$0xff]
        %v311 = vld [vmem:[%s1 + $0x1d8] sm:$0xff]
        %v312 = vld [vmem:[%s1 + $0x1e0] sm:$0xff]
        %v313 = vld [vmem:[%s1 + $0x1e8] sm:$0xff]
        %v314 = vld [vmem:[%s1 + $0x1f0] sm:$0xff]
        %v315 = vld [vmem:[%s1 + $0x1f8] sm:$0xff]
        %v316 = vld [vmem:[%s1 + $0x200] sm:$0xff]
        %v317 = vld [vmem:[%s1 + $0x208] sm:$0xff]
        %v318 = vld [vmem:[%s1 + $0x210] sm:$0xff]
        %v319 = vld [vmem:[%s1 + $0x218] sm:$0xff]
        %v320 = vld [vmem:[%s1 + $0x220] sm:$0xff]
        %v321 = vld [vmem:[%s1 + $0x228] sm:$0xff]
        %v322 = vld [vmem:[%s1 + $0x230] sm:$0xff]
        %v323 = vld [vmem:[%s1 + $0x238] sm:$0xff]
        %v324 = vld [vmem:[%s1 + $0x240] sm:$0xff]
        %v325 = vld [vmem:[%s1 + $0x248] sm:$0xff]
        %v326 = vld [vmem:[%s1 + $0x250] sm:$0xff]
        %v327 = vld [vmem:[%s1 + $0x258] sm:$0xff]
        %v328 = vld [vmem:[%s1 + $0x260] sm:$0xff]
        %v329 = vld [vmem:[%s1 + $0x268] sm:$0xff]
        %v330 = vld [vmem:[%s1 + $0x270] sm:$0xff]
        %v331 = vld [vmem:[%s1 + $0x278] sm:$0xff]
        %v332 = vld [vmem:[%s1 + $0x280] sm:$0xff]
        %v333 = vld [vmem:[%s1 + $0x288] sm:$0xff]
        %v334 = vld [vmem:[%s1 + $0x290] sm:$0xff]
        %v335 = vld [vmem:[%s1 + $0x298] sm:$0xff]
        %v336 = vld [vmem:[%s1 + $0x2a0] sm:$0xff]
        %v337 = vld [vmem:[%s1 + $0x2a8] sm:$0xff]
        %v338 = vld [vmem:[%s1 + $0x2b0] sm:$0xff]
        %v339 = vld [vmem:[%s1 + $0x2b8] sm:$0xff]
        %v340 = vld [vmem:[%s1 + $0x2c0] sm:$0xff]
        %v341 = vld [vmem:[%s1 + $0x2c8] sm:$0xff]
        %v342 = vld [vmem:[%s1 + $0x2d0] sm:$0xff]
        %v343 = vld [vmem:[%s1 + $0x2d8] sm:$0xff]
        %v344 = vld [vmem:[%s1 + $0x2e0] sm:$0xff]
        %v345 = vld [vmem:[%s1 + $0x2e8] sm:$0xff]
        %v346 = vld [vmem:[%s1 + $0x2f0] sm:$0xff]
        %v347 = vld [vmem:[%s1 + $0x2f8] sm:$0xff]
        %v349 = vlaneseq
        %v350 = vshrl.u32 %v349, 7
        %v351 = vsub.s32 0, %v350
        %v352 = vrot.slane %v236, %v351
        %v353 = vlaneseq
        %v354 = vshrl.u32 %v353, 7
        %v355 = vsub.s32 1, %v354
        %v356 = vrot.slane %v236, %v355
        %v455 = vunpack.c.l.b16 %v252
        %v456 = vunpack.c.h.b16 %v252
        %v457 = vunpack.c.l.b16 %v253
        %v458 = vunpack.c.h.b16 %v253
        %v459 = vunpack.c.l.b16 %v254
        %v460 = vunpack.c.h.b16 %v254
        %v461 = vunpack.c.l.b16 %v255
        %v462 = vunpack.c.h.b16 %v255
        %v463 = vunpack.c.l.b16 %v256
        %v464 = vunpack.c.h.b16 %v256
        %v465 = vunpack.c.l.b16 %v257
        %v466 = vunpack.c.h.b16 %v257
        %v467 = vunpack.c.l.b16 %v258
        %v468 = vunpack.c.h.b16 %v258
        %v469 = vunpack.c.l.b16 %v259
        %v470 = vunpack.c.h.b16 %v259
        %v471 = vunpack.c.l.b16 %v260
        %v472 = vunpack.c.h.b16 %v260
        %v473 = vunpack.c.l.b16 %v261
        %v474 = vunpack.c.h.b16 %v261
        %v475 = vunpack.c.l.b16 %v262
        %v476 = vunpack.c.h.b16 %v262
        %v477 = vunpack.c.l.b16 %v263
        %v478 = vunpack.c.h.b16 %v263
        %v479 = vunpack.c.l.b16 %v264
        %v480 = vunpack.c.h.b16 %v264
        %v481 = vunpack.c.l.b16 %v265
        %v482 = vunpack.c.h.b16 %v265
        %v483 = vunpack.c.l.b16 %v266
        %v484 = vunpack.c.h.b16 %v266
        %v485 = vunpack.c.l.b16 %v267
        %v486 = vunpack.c.h.b16 %v267
        %v487 = vunpack.c.l.b16 %v268
        %v488 = vunpack.c.h.b16 %v268
        %v489 = vunpack.c.l.b16 %v269
        %v490 = vunpack.c.h.b16 %v269
        %v491 = vunpack.c.l.b16 %v270
        %v492 = vunpack.c.h.b16 %v270
        %v493 = vunpack.c.l.b16 %v271
        %v494 = vunpack.c.h.b16 %v271
        %v495 = vunpack.c.l.b16 %v272
        %v496 = vunpack.c.h.b16 %v272
        %v497 = vunpack.c.l.b16 %v273
        %v498 = vunpack.c.h.b16 %v273
        %v499 = vunpack.c.l.b16 %v274
        %v500 = vunpack.c.h.b16 %v274
        %v501 = vunpack.c.l.b16 %v275
        %v502 = vunpack.c.h.b16 %v275
        %v503 = vunpack.c.l.b16 %v276
        %v504 = vunpack.c.h.b16 %v276
        %v505 = vunpack.c.l.b16 %v277
        %v506 = vunpack.c.h.b16 %v277
        %v507 = vunpack.c.l.b16 %v278
        %v508 = vunpack.c.h.b16 %v278
        %v509 = vunpack.c.l.b16 %v279
        %v510 = vunpack.c.h.b16 %v279
        %v511 = vunpack.c.l.b16 %v280
        %v512 = vunpack.c.h.b16 %v280
        %v513 = vunpack.c.l.b16 %v281
        %v514 = vunpack.c.h.b16 %v281
        %v515 = vunpack.c.l.b16 %v282
        %v516 = vunpack.c.h.b16 %v282
        %v517 = vunpack.c.l.b16 %v283
        %v518 = vunpack.c.h.b16 %v283
        %v519 = vunpack.c.l.b16 %v284
        %v520 = vunpack.c.h.b16 %v284
        %v521 = vunpack.c.l.b16 %v285
        %v522 = vunpack.c.h.b16 %v285
        %v523 = vunpack.c.l.b16 %v286
        %v524 = vunpack.c.h.b16 %v286
        %v525 = vunpack.c.l.b16 %v287
        %v526 = vunpack.c.h.b16 %v287
        %v527 = vunpack.c.l.b16 %v288
        %v528 = vunpack.c.h.b16 %v288
        %v529 = vunpack.c.l.b16 %v289
        %v530 = vunpack.c.h.b16 %v289
        %v531 = vunpack.c.l.b16 %v290
        %v532 = vunpack.c.h.b16 %v290
        %v533 = vunpack.c.l.b16 %v291
        %v534 = vunpack.c.h.b16 %v291
        %v535 = vunpack.c.l.b16 %v292
        %v536 = vunpack.c.h.b16 %v292
        %v537 = vunpack.c.l.b16 %v293
        %v538 = vunpack.c.h.b16 %v293
        %v539 = vunpack.c.l.b16 %v294
        %v540 = vunpack.c.h.b16 %v294
        %v541 = vunpack.c.l.b16 %v295
        %v542 = vunpack.c.h.b16 %v295
        %v543 = vunpack.c.l.b16 %v296
        %v544 = vunpack.c.h.b16 %v296
        %v545 = vunpack.c.l.b16 %v297
        %v546 = vunpack.c.h.b16 %v297
        %v547 = vunpack.c.l.b16 %v298
        %v548 = vunpack.c.h.b16 %v298
        %v549 = vunpack.c.l.b16 %v299
        %v550 = vunpack.c.h.b16 %v299
        %v551 = vunpack.c.l.b16 %v300
        %v552 = vunpack.c.h.b16 %v300
        %v553 = vunpack.c.l.b16 %v301
        %v554 = vunpack.c.h.b16 %v301
        %v555 = vunpack.c.l.b16 %v302
        %v556 = vunpack.c.h.b16 %v302
        %v557 = vunpack.c.l.b16 %v303
        %v558 = vunpack.c.h.b16 %v303
        %v559 = vunpack.c.l.b16 %v304
        %v560 = vunpack.c.h.b16 %v304
        %v561 = vunpack.c.l.b16 %v305
        %v562 = vunpack.c.h.b16 %v305
        %v563 = vunpack.c.l.b16 %v306
        %v564 = vunpack.c.h.b16 %v306
        %v565 = vunpack.c.l.b16 %v307
        %v566 = vunpack.c.h.b16 %v307
        %v567 = vunpack.c.l.b16 %v308
        %v568 = vunpack.c.h.b16 %v308
        %v569 = vunpack.c.l.b16 %v309
        %v570 = vunpack.c.h.b16 %v309
        %v571 = vunpack.c.l.b16 %v310
        %v572 = vunpack.c.h.b16 %v310
        %v573 = vunpack.c.l.b16 %v311
        %v574 = vunpack.c.h.b16 %v311
        %v575 = vunpack.c.l.b16 %v312
        %v576 = vunpack.c.h.b16 %v312
        %v577 = vunpack.c.l.b16 %v313
        %v578 = vunpack.c.h.b16 %v313
        %v579 = vunpack.c.l.b16 %v314
        %v580 = vunpack.c.h.b16 %v314
        %v581 = vunpack.c.l.b16 %v315
        %v582 = vunpack.c.h.b16 %v315
        %v583 = vunpack.c.l.b16 %v316
        %v584 = vunpack.c.h.b16 %v316
        %v585 = vunpack.c.l.b16 %v317
        %v586 = vunpack.c.h.b16 %v317
        %v587 = vunpack.c.l.b16 %v318
        %v588 = vunpack.c.h.b16 %v318
        %v589 = vunpack.c.l.b16 %v319
        %v590 = vunpack.c.h.b16 %v319
        %v591 = vunpack.c.l.b16 %v320
        %v592 = vunpack.c.h.b16 %v320
        %v593 = vunpack.c.l.b16 %v321
        %v594 = vunpack.c.h.b16 %v321
        %v595 = vunpack.c.l.b16 %v322
        %v596 = vunpack.c.h.b16 %v322
        %v597 = vunpack.c.l.b16 %v323
        %v598 = vunpack.c.h.b16 %v323
        %v599 = vunpack.c.l.b16 %v324
        %v600 = vunpack.c.h.b16 %v324
        %v601 = vunpack.c.l.b16 %v325
        %v602 = vunpack.c.h.b16 %v325
        %v603 = vunpack.c.l.b16 %v326
        %v604 = vunpack.c.h.b16 %v326
        %v605 = vunpack.c.l.b16 %v327
        %v606 = vunpack.c.h.b16 %v327
        %v607 = vunpack.c.l.b16 %v328
        %v608 = vunpack.c.h.b16 %v328
        %v609 = vunpack.c.l.b16 %v329
        %v610 = vunpack.c.h.b16 %v329
        %v611 = vunpack.c.l.b16 %v330
        %v612 = vunpack.c.h.b16 %v330
        %v613 = vunpack.c.l.b16 %v331
        %v614 = vunpack.c.h.b16 %v331
        %v615 = vunpack.c.l.b16 %v332
        %v616 = vunpack.c.h.b16 %v332
        %v617 = vunpack.c.l.b16 %v333
        %v618 = vunpack.c.h.b16 %v333
        %v619 = vunpack.c.l.b16 %v334
        %v620 = vunpack.c.h.b16 %v334
        %v621 = vunpack.c.l.b16 %v335
        %v622 = vunpack.c.h.b16 %v335
        %v623 = vunpack.c.l.b16 %v336
        %v624 = vunpack.c.h.b16 %v336
        %v625 = vunpack.c.l.b16 %v337
        %v626 = vunpack.c.h.b16 %v337
        %v627 = vunpack.c.l.b16 %v338
        %v628 = vunpack.c.h.b16 %v338
        %v629 = vunpack.c.l.b16 %v339
        %v630 = vunpack.c.h.b16 %v339
        %v631 = vunpack.c.l.b16 %v340
        %v632 = vunpack.c.h.b16 %v340
        %v633 = vunpack.c.l.b16 %v341
        %v634 = vunpack.c.h.b16 %v341
        %v635 = vunpack.c.l.b16 %v342
        %v636 = vunpack.c.h.b16 %v342
        %v637 = vunpack.c.l.b16 %v343
        %v638 = vunpack.c.h.b16 %v343
        %v639 = vunpack.c.l.b16 %v344
        %v640 = vunpack.c.h.b16 %v344
        %v641 = vunpack.c.l.b16 %v345
        %v642 = vunpack.c.h.b16 %v345
        %v643 = vunpack.c.l.b16 %v346
        %v644 = vunpack.c.h.b16 %v346
        %v645 = vunpack.c.l.b16 %v347
        %v646 = vunpack.c.h.b16 %v347
        %v647 = vpack.c.b16 %v457, %v455
        %v648 = vpack.c.b16 %v458, %v456
        %v649 = vpack.c.b16 %v461, %v459
        %v650 = vpack.c.b16 %v462, %v460
        %v651 = vpack.c.b16 %v465, %v463
        %v652 = vpack.c.b16 %v466, %v464
        %v653 = vpack.c.b16 %v469, %v467
        %v654 = vpack.c.b16 %v470, %v468
        %v655 = vpack.c.b16 %v473, %v471
        %v656 = vpack.c.b16 %v474, %v472
        %v657 = vpack.c.b16 %v477, %v475
        %v658 = vpack.c.b16 %v478, %v476
        %v659 = vpack.c.b16 %v481, %v479
        %v660 = vpack.c.b16 %v482, %v480
        %v661 = vpack.c.b16 %v485, %v483
        %v662 = vpack.c.b16 %v486, %v484
        %v663 = vpack.c.b16 %v489, %v487
        %v664 = vpack.c.b16 %v490, %v488
        %v665 = vpack.c.b16 %v493, %v491
        %v666 = vpack.c.b16 %v494, %v492
        %v667 = vpack.c.b16 %v497, %v495
        %v668 = vpack.c.b16 %v498, %v496
        %v669 = vpack.c.b16 %v501, %v499
        %v670 = vpack.c.b16 %v502, %v500
        %v671 = vpack.c.b16 %v505, %v503
        %v672 = vpack.c.b16 %v506, %v504
        %v673 = vpack.c.b16 %v509, %v507
        %v674 = vpack.c.b16 %v510, %v508
        %v675 = vpack.c.b16 %v513, %v511
        %v676 = vpack.c.b16 %v514, %v512
        %v677 = vpack.c.b16 %v517, %v515
        %v678 = vpack.c.b16 %v518, %v516
        %v679 = vpack.c.b16 %v521, %v519
        %v680 = vpack.c.b16 %v522, %v520
        %v681 = vpack.c.b16 %v525, %v523
        %v682 = vpack.c.b16 %v526, %v524
        %v683 = vpack.c.b16 %v529, %v527
        %v684 = vpack.c.b16 %v530, %v528
        %v685 = vpack.c.b16 %v533, %v531
        %v686 = vpack.c.b16 %v534, %v532
        %v687 = vpack.c.b16 %v537, %v535
        %v688 = vpack.c.b16 %v538, %v536
        %v689 = vpack.c.b16 %v541, %v539
        %v690 = vpack.c.b16 %v542, %v540
        %v691 = vpack.c.b16 %v545, %v543
        %v692 = vpack.c.b16 %v546, %v544
        %v693 = vpack.c.b16 %v549, %v547
        %v694 = vpack.c.b16 %v550, %v548
        %v695 = vpack.c.b16 %v553, %v551
        %v696 = vpack.c.b16 %v554, %v552
        %v697 = vpack.c.b16 %v557, %v555
        %v698 = vpack.c.b16 %v558, %v556
        %v699 = vpack.c.b16 %v561, %v559
        %v700 = vpack.c.b16 %v562, %v560
        %v701 = vpack.c.b16 %v565, %v563
        %v702 = vpack.c.b16 %v566, %v564
        %v703 = vpack.c.b16 %v569, %v567
        %v704 = vpack.c.b16 %v570, %v568
        %v705 = vpack.c.b16 %v573, %v571
        %v706 = vpack.c.b16 %v574, %v572
        %v707 = vpack.c.b16 %v577, %v575
        %v708 = vpack.c.b16 %v578, %v576
        %v709 = vpack.c.b16 %v581, %v579
        %v710 = vpack.c.b16 %v582, %v580
        %v711 = vpack.c.b16 %v585, %v583
        %v712 = vpack.c.b16 %v586, %v584
        %v713 = vpack.c.b16 %v589, %v587
        %v714 = vpack.c.b16 %v590, %v588
        %v715 = vpack.c.b16 %v593, %v591
        %v716 = vpack.c.b16 %v594, %v592
        %v717 = vpack.c.b16 %v597, %v595
        %v718 = vpack.c.b16 %v598, %v596
        %v719 = vpack.c.b16 %v601, %v599
        %v720 = vpack.c.b16 %v602, %v600
        %v721 = vpack.c.b16 %v605, %v603
        %v722 = vpack.c.b16 %v606, %v604
        %v723 = vpack.c.b16 %v609, %v607
        %v724 = vpack.c.b16 %v610, %v608
        %v725 = vpack.c.b16 %v613, %v611
        %v726 = vpack.c.b16 %v614, %v612
        %v727 = vpack.c.b16 %v617, %v615
        %v728 = vpack.c.b16 %v618, %v616
        %v729 = vpack.c.b16 %v621, %v619
        %v730 = vpack.c.b16 %v622, %v620
        %v731 = vpack.c.b16 %v625, %v623
        %v732 = vpack.c.b16 %v626, %v624
        %v733 = vpack.c.b16 %v629, %v627
        %v734 = vpack.c.b16 %v630, %v628
        %v735 = vpack.c.b16 %v633, %v631
        %v736 = vpack.c.b16 %v634, %v632
        %v737 = vpack.c.b16 %v637, %v635
        %v738 = vpack.c.b16 %v638, %v636
        %v739 = vpack.c.b16 %v641, %v639
        %v740 = vpack.c.b16 %v642, %v640
        %v741 = vpack.c.b16 %v645, %v643
        %v742 = vpack.c.b16 %v646, %v644
        %839 = vmatprep.subr.bf16.mxu0 %v662
        %840 = vmatpush1.bf16.msra.mxu0 %v661
        %841 = vmatprep.subr.bf16.mxu0 %v660
        %842 = vmatpush1.bf16.msra.mxu0 %v659
        %843 = vmatprep.subr.bf16.mxu0 %v658
        %844 = vmatpush1.bf16.msra.mxu0 %v657
        %845 = vmatprep.subr.bf16.mxu0 %v656
        %846 = vmatpush1.bf16.msra.mxu0 %v655
        %847 = vmatprep.subr.bf16.mxu0 %v654
        %848 = vmatpush1.bf16.msra.mxu0 %v653
        %849 = vmatprep.subr.bf16.mxu0 %v652
        %850 = vmatpush1.bf16.msra.mxu0 %v651
        %851 = vmatprep.subr.bf16.mxu0 %v650
        %852 = vmatpush1.bf16.msra.mxu0 %v649
        %853 = vmatprep.subr.bf16.mxu0 %v648
        %854 = vmatpush1.bf16.msra.mxu0 %v647
        %855 = vmatprep.subr.bf16.mxu0 %v678
        %856 = vmatpush2.bf16.msra.mxu0 %v677
        %857 = vmatprep.subr.bf16.mxu0 %v676
        %858 = vmatpush2.bf16.msra.mxu0 %v675
        %859 = vmatprep.subr.bf16.mxu0 %v674
        %860 = vmatpush2.bf16.msra.mxu0 %v673
        %861 = vmatprep.subr.bf16.mxu0 %v672
        %862 = vmatpush2.bf16.msra.mxu0 %v671
        %863 = vmatprep.subr.bf16.mxu0 %v670
        %864 = vmatpush2.bf16.msra.mxu0 %v669
        %865 = vmatprep.subr.bf16.mxu0 %v668
        %866 = vmatpush2.bf16.msra.mxu0 %v667
        %867 = vmatprep.subr.bf16.mxu0 %v666
        %868 = vmatpush2.bf16.msra.mxu0 %v665
        %869 = vmatprep.subr.bf16.mxu0 %v664
        %870 = vmatpush2.bf16.msra.mxu0 %v663
        %871 = vmatprep.mubr.bf16.mxu0 %v247
        %872 = vmatmul.mubr.bf16.gmra.mxu0 %v246
        %v873 = vpop.f32.mrf.mxu0
        %v874 = vadd.f32 %v352, %v873
        %v875 = vpop.f32.mrf.mxu0
        %v876 = vadd.f32 %v356, %v875
        %v877 = vpop.f32.mrf.mxu0
        %v878 = vadd.f32 %v352, %v877
        %v879 = vpop.f32.mrf.mxu0
        %v880 = vadd.f32 %v356, %v879
        %881 = vdwg.mxu0
        %882 = vmatprep.subr.bf16.mxu0 %v694
        %883 = vmatpush1.bf16.msra.mxu0 %v693
        %884 = vmatprep.subr.bf16.mxu0 %v692
        %885 = vmatpush1.bf16.msra.mxu0 %v691
        %886 = vmatprep.subr.bf16.mxu0 %v690
        %887 = vmatpush1.bf16.msra.mxu0 %v689
        %888 = vmatprep.subr.bf16.mxu0 %v688
        %889 = vmatpush1.bf16.msra.mxu0 %v687
        %890 = vmatprep.subr.bf16.mxu0 %v686
        %891 = vmatpush1.bf16.msra.mxu0 %v685
        %892 = vmatprep.subr.bf16.mxu0 %v684
        %893 = vmatpush1.bf16.msra.mxu0 %v683
        %894 = vmatprep.subr.bf16.mxu0 %v682
        %895 = vmatpush1.bf16.msra.mxu0 %v681
        %896 = vmatprep.subr.bf16.mxu0 %v680
        %897 = vmatpush1.bf16.msra.mxu0 %v679
        %898 = vmatprep.subr.bf16.mxu0 %v710
        %899 = vmatpush2.bf16.msra.mxu0 %v709
        %900 = vmatprep.subr.bf16.mxu0 %v708
        %901 = vmatpush2.bf16.msra.mxu0 %v707
        %902 = vmatprep.subr.bf16.mxu0 %v706
        %903 = vmatpush2.bf16.msra.mxu0 %v705
        %904 = vmatprep.subr.bf16.mxu0 %v704
        %905 = vmatpush2.bf16.msra.mxu0 %v703
        %906 = vmatprep.subr.bf16.mxu0 %v702
        %907 = vmatpush2.bf16.msra.mxu0 %v701
        %908 = vmatprep.subr.bf16.mxu0 %v700
        %909 = vmatpush2.bf16.msra.mxu0 %v699
        %910 = vmatprep.subr.bf16.mxu0 %v698
        %911 = vmatpush2.bf16.msra.mxu0 %v697
        %912 = vmatprep.subr.bf16.mxu0 %v696
        %913 = vmatpush2.bf16.msra.mxu0 %v695
        %914 = vmatprep.mubr.bf16.mxu0 %v249
        %915 = vmatmul.mubr.bf16.gmra.mxu0 %v248
        %v916 = vpop.f32.mrf.mxu0
        %v917 = vadd.f32 %v874, %v916
        %v918 = vpop.f32.mrf.mxu0
        %v919 = vadd.f32 %v876, %v918
        %v920 = vpop.f32.mrf.mxu0
        %v921 = vadd.f32 %v878, %v920
        %v922 = vpop.f32.mrf.mxu0
        %v923 = vadd.f32 %v880, %v922
        %924 = vdwg.mxu0
        %925 = vmatprep.subr.bf16.mxu0 %v726
        %926 = vmatpush1.bf16.msra.mxu0 %v725
        %927 = vmatprep.subr.bf16.mxu0 %v724
        %928 = vmatpush1.bf16.msra.mxu0 %v723
        %929 = vmatprep.subr.bf16.mxu0 %v722
        %930 = vmatpush1.bf16.msra.mxu0 %v721
        %931 = vmatprep.subr.bf16.mxu0 %v720
        %932 = vmatpush1.bf16.msra.mxu0 %v719
        %933 = vmatprep.subr.bf16.mxu0 %v718
        %934 = vmatpush1.bf16.msra.mxu0 %v717
        %935 = vmatprep.subr.bf16.mxu0 %v716
        %936 = vmatpush1.bf16.msra.mxu0 %v715
        %937 = vmatprep.subr.bf16.mxu0 %v714
        %938 = vmatpush1.bf16.msra.mxu0 %v713
        %939 = vmatprep.subr.bf16.mxu0 %v712
        %940 = vmatpush1.bf16.msra.mxu0 %v711
        %941 = vmatprep.subr.bf16.mxu0 %v742
        %942 = vmatpush2.bf16.msra.mxu0 %v741
        %943 = vmatprep.subr.bf16.mxu0 %v740
        %944 = vmatpush2.bf16.msra.mxu0 %v739
        %945 = vmatprep.subr.bf16.mxu0 %v738
        %946 = vmatpush2.bf16.msra.mxu0 %v737
        %947 = vmatprep.subr.bf16.mxu0 %v736
        %948 = vmatpush2.bf16.msra.mxu0 %v735
        %949 = vmatprep.subr.bf16.mxu0 %v734
        %950 = vmatpush2.bf16.msra.mxu0 %v733
        %951 = vmatprep.subr.bf16.mxu0 %v732
        %952 = vmatpush2.bf16.msra.mxu0 %v731
        %953 = vmatprep.subr.bf16.mxu0 %v730
        %954 = vmatpush2.bf16.msra.mxu0 %v729
        %955 = vmatprep.subr.bf16.mxu0 %v728
        %956 = vmatpush2.bf16.msra.mxu0 %v727
        %957 = vmatprep.mubr.bf16.mxu0 %v251
        %958 = vmatmul.mubr.bf16.gmra.mxu0 %v250
        %v959 = vpop.f32.mrf.mxu0
        %v960 = vadd.f32 %v917, %v959
        %v961 = vpop.f32.mrf.mxu0
        %v962 = vadd.f32 %v919, %v961
        %v963 = vpop.f32.mrf.mxu0
        %v964 = vadd.f32 %v921, %v963
        %v965 = vpop.f32.mrf.mxu0
        %v966 = vadd.f32 %v923, %v965
        %967 = vdwg.mxu0
        %v968 = vmax.f32 %v960, 0.0
        %v969 = vmax.f32 %v962, 0.0
        %v970 = vmax.f32 %v964, 0.0
        %v971 = vmax.f32 %v966, 0.0
        %v972 = vpack.c.bf16 %v970, %v968
        %v973 = vpack.c.bf16 %v971, %v969
        %vm974 = vcmask 1040384
        %vm975 = vsmask.f32 256
        %vm976 = vmand %vm974, %vm975
        %vm977 = vcmask 520196
        %vm978 = vsmask.f32 4352
        %vm979 = vmand %vm977, %vm978
        %vm980 = vmor %vm979, %vm976
        %v981 = vld [vmem:[#allocation2] sm:$0x11]
        %v982 = vsel %vm980, 0, %v981
        %983 = vst [vmem:[#allocation2] sm:$0x11] %v982
        %vm984 = vsmask.f32 7938
        %vm985 = vmand %vm974, %vm984
        %vm986 = vsmask.f32 7954
        %vm987 = vmand %vm977, %vm986
        %vm988 = vmor %vm987, %vm985
        %v989 = vld [vmem:[#allocation2 + $0x10] sm:$0x11]
        %v990 = vsel %vm988, 0, %v989
        %991 = vst [vmem:[#allocation2 + $0x10] sm:$0x11] %v990
        %v994 = vunpack.c.l.b16 %v972
        %v995 = vunpack.c.l.b16 %v973
        %v996 = vunpack.c.h.b16 %v972
        %v997 = vunpack.c.h.b16 %v973
        %v998 = vpack.c.b16 %v995, %v994
        %v999 = vpack.c.b16 %v997, %v996
        %vm1000 = vsmask.f32 4368
        %vm1001 = vmor %vm975, %vm1000
        %v1003 = vshrl.u32 %v998, 16
        %v1005 = vrot.slane %v1003, 7
        %v1006 = vshll.u32 %v998, 16
        %v1008 = vor.u32 %v1005, %v1006
        %v1009 = vrot.slane %v1005, 4
        %v1011 = vshrl.u32 %v999, 16
        %v1013 = vrot.slane %v1011, 7
        %v1014 = vshll.u32 %v999, 16
        %v1016 = vor.u32 %v1013, %v1014
        %v1017 = vsel %vm1001, %v1009, %v1016
        %v1018 = vrot.slane %v1013, 4
        %vm1022 = vcmask 1043456
        %vm1023 = vmand %vm1022, %vm984
        %vm1024 = vcmask 523268
        %vm1025 = vmand %vm1024, %vm986
        %vm1026 = vmor %vm1025, %vm1023
        %v1027 = vld [vmem:[#allocation2] sm:$0xff]
        %v1028 = vsel %vm1026, %v1008, %v1027
        %1029 = vst [vmem:[#allocation2] sm:$0xff] %v1028
        %vm1030 = vcmask 1043456
        %vm1031 = vcmask 523268
        %vm1032 = vmor %vm1031, %vm1030
        %1033 = vst.msk [vmem:[#allocation2 + $0x8] sm:$0xff] %vm1032, %v1017
        %v1034 = vld [vmem:[#allocation2 + $0x10] sm:$0x11]
        %v1035 = vsel %vm980, %v1018, %v1034
        %1036 = vst [vmem:[#allocation2 + $0x10] sm:$0x11] %v1035
        %s1037 = scalar_lea.vmem %s2, 96
        %v1038 = vld [vmem:[%s1037] sm:$0xf]
        %v1039 = vld [vmem:[%s1037 + $0x4] sm:$0xf]
        %v1040 = vld [vmem:[%s1037 + $0x8] sm:$0xf]
        %v1041 = vld [vmem:[%s1037 + $0xc] sm:$0xf]
        %v1042 = vld [vmem:[%s1037 + $0x10] sm:$0xf]
        %v1043 = vld [vmem:[%s1037 + $0x14] sm:$0xf]
        %v1044 = vld [vmem:[%s1037 + $0x18] sm:$0xf]
        %v1045 = vld [vmem:[%s1037 + $0x1c] sm:$0xf]
        %v1046 = vld [vmem:[%s1037 + $0x20] sm:$0xf]
        %v1047 = vld [vmem:[%s1037 + $0x24] sm:$0xf]
        %v1048 = vld [vmem:[%s1037 + $0x28] sm:$0xf]
        %v1049 = vld [vmem:[%s1037 + $0x2c] sm:$0xf]
        %v1050 = vld [vmem:[%s1037 + $0x30] sm:$0xf]
        %v1051 = vld [vmem:[%s1037 + $0x34] sm:$0xf]
        %v1052 = vld [vmem:[%s1037 + $0x38] sm:$0xf]
        %v1053 = vld [vmem:[%s1037 + $0x3c] sm:$0xf]
        %v1054 = vld [vmem:[%s1037 + $0x40] sm:$0xf]
        %v1055 = vld [vmem:[%s1037 + $0x44] sm:$0xf]
        %v1056 = vld [vmem:[%s1037 + $0x48] sm:$0xf]
        %v1057 = vld [vmem:[%s1037 + $0x4c] sm:$0xf]
        %v1058 = vld [vmem:[%s1037 + $0x50] sm:$0xf]
        %v1059 = vld [vmem:[%s1037 + $0x54] sm:$0xf]
        %v1060 = vld [vmem:[%s1037 + $0x58] sm:$0xf]
        %v1061 = vld [vmem:[%s1037 + $0x5c] sm:$0xf]
        %v1062 = vld [vmem:[#allocation2] sm:$0xff]
        %v1063 = vld [vmem:[#allocation2 + $0x8] sm:$0xff]
        %v1064 = vld [vmem:[%s2] sm:$0xf]
        %v1065 = vld [vmem:[%s2 + $0x4] sm:$0xf]
        %v1066 = vld [vmem:[%s2 + $0x8] sm:$0xf]
        %v1067 = vld [vmem:[%s2 + $0xc] sm:$0xf]
        %v1068 = vld [vmem:[%s2 + $0x10] sm:$0xf]
        %v1069 = vld [vmem:[%s2 + $0x14] sm:$0xf]
        %v1070 = vld [vmem:[%s2 + $0x18] sm:$0xf]
        %v1071 = vld [vmem:[%s2 + $0x1c] sm:$0xf]
        %v1072 = vld [vmem:[%s2 + $0x20] sm:$0xf]
        %v1073 = vld [vmem:[%s2 + $0x24] sm:$0xf]
        %v1074 = vld [vmem:[%s2 + $0x28] sm:$0xf]
        %v1075 = vld [vmem:[%s2 + $0x2c] sm:$0xf]
        %v1076 = vld [vmem:[%s2 + $0x30] sm:$0xf]
        %v1077 = vld [vmem:[%s2 + $0x34] sm:$0xf]
        %v1078 = vld [vmem:[%s2 + $0x38] sm:$0xf]
        %v1079 = vld [vmem:[%s2 + $0x3c] sm:$0xf]
        %v1080 = vld [vmem:[%s2 + $0x40] sm:$0xf]
        %v1081 = vld [vmem:[%s2 + $0x44] sm:$0xf]
        %v1082 = vld [vmem:[%s2 + $0x48] sm:$0xf]
        %v1083 = vld [vmem:[%s2 + $0x4c] sm:$0xf]
        %v1084 = vld [vmem:[%s2 + $0x50] sm:$0xf]
        %v1085 = vld [vmem:[%s2 + $0x54] sm:$0xf]
        %v1086 = vld [vmem:[%s2 + $0x58] sm:$0xf]
        %v1087 = vld [vmem:[%s2 + $0x5c] sm:$0xf]
        %v1090 = vunpack.c.l.b16 %v1062
        %v1091 = vunpack.c.h.b16 %v1062
        %v1092 = vunpack.c.l.b16 %v1063
        %v1093 = vunpack.c.h.b16 %v1063
        %v1094 = vpack.c.b16 %v1092, %v1090
        %v1095 = vpack.c.b16 %v1093, %v1091
        %v1121 = vunpack.c.l.b16 %v1064
        %v1122 = vunpack.c.l.b16 %v1065
        %v1123 = vunpack.c.l.b16 %v1066
        %v1124 = vunpack.c.l.b16 %v1067
        %v1125 = vunpack.c.l.b16 %v1068
        %v1126 = vunpack.c.l.b16 %v1069
        %v1127 = vunpack.c.l.b16 %v1070
        %v1128 = vunpack.c.l.b16 %v1071
        %v1129 = vunpack.c.l.b16 %v1072
        %v1130 = vunpack.c.l.b16 %v1073
        %v1131 = vunpack.c.l.b16 %v1074
        %v1132 = vunpack.c.l.b16 %v1075
        %v1133 = vunpack.c.l.b16 %v1076
        %v1134 = vunpack.c.l.b16 %v1077
        %v1135 = vunpack.c.l.b16 %v1078
        %v1136 = vunpack.c.l.b16 %v1079
        %v1137 = vunpack.c.l.b16 %v1080
        %v1138 = vunpack.c.l.b16 %v1081
        %v1139 = vunpack.c.l.b16 %v1082
        %v1140 = vunpack.c.l.b16 %v1083
        %v1141 = vunpack.c.l.b16 %v1084
        %v1142 = vunpack.c.l.b16 %v1085
        %v1143 = vunpack.c.l.b16 %v1086
        %v1144 = vunpack.c.l.b16 %v1087
        %v1145 = vpack.c.b16 %v1122, %v1121
        %v1146 = vpack.c.b16 %v1124, %v1123
        %v1147 = vpack.c.b16 %v1126, %v1125
        %v1148 = vpack.c.b16 %v1128, %v1127
        %v1149 = vpack.c.b16 %v1130, %v1129
        %v1150 = vpack.c.b16 %v1132, %v1131
        %v1151 = vpack.c.b16 %v1134, %v1133
        %v1152 = vpack.c.b16 %v1136, %v1135
        %v1153 = vpack.c.b16 %v1138, %v1137
        %v1154 = vpack.c.b16 %v1140, %v1139
        %v1155 = vpack.c.b16 %v1142, %v1141
        %v1156 = vpack.c.b16 %v1144, %v1143
        %vm1169 = vcmask 523264
        %v1171 = vsel %vm1169, %v1095, 0
        %1173 = vmatprep.subr.bf16.mxu0 0
        %1174 = vmatpush1.bf16.msra.mxu0 %v1152
        %1175 = vmatprep.subr.bf16.mxu0 0
        %1176 = vmatpush1.bf16.msra.mxu0 %v1151
        %1177 = vmatprep.subr.bf16.mxu0 0
        %1178 = vmatpush1.bf16.msra.mxu0 %v1150
        %1179 = vmatprep.subr.bf16.mxu0 0
        %1180 = vmatpush1.bf16.msra.mxu0 %v1149
        %1181 = vmatprep.subr.bf16.mxu0 0
        %1182 = vmatpush1.bf16.msra.mxu0 %v1148
        %1183 = vmatprep.subr.bf16.mxu0 0
        %1184 = vmatpush1.bf16.msra.mxu0 %v1147
        %1185 = vmatprep.subr.bf16.mxu0 0
        %1186 = vmatpush1.bf16.msra.mxu0 %v1146
        %1187 = vmatprep.subr.bf16.mxu0 0
        %1188 = vmatpush1.bf16.msra.mxu0 %v1145
        %1189 = vmatprep.subr.bf16.mxu0 0
        %1190 = vmatpush2.bf16.msra.mxu0 0
        %1191 = vmatprep.subr.bf16.mxu0 0
        %1192 = vmatpush2.bf16.msra.mxu0 0
        %1193 = vmatprep.subr.bf16.mxu0 0
        %1194 = vmatpush2.bf16.msra.mxu0 0
        %1195 = vmatprep.subr.bf16.mxu0 0
        %1196 = vmatpush2.bf16.msra.mxu0 0
        %1197 = vmatprep.subr.bf16.mxu0 0
        %1198 = vmatpush2.bf16.msra.mxu0 %v1156
        %1199 = vmatprep.subr.bf16.mxu0 0
        %1200 = vmatpush2.bf16.msra.mxu0 %v1155
        %1201 = vmatprep.subr.bf16.mxu0 0
        %1202 = vmatpush2.bf16.msra.mxu0 %v1154
        %1203 = vmatprep.subr.bf16.mxu0 0
        %1204 = vmatpush2.bf16.msra.mxu0 %v1153
        %1205 = vmatprep.mubr.bf16.mxu0 %v1171
        %1206 = vmatmul.mubr.bf16.gmra.mxu0 %v1094
        %v1207 = vpop.f32.mrf.mxu0
        %v1208 = vadd.f32 0.0, %v1207
        %v1209 = vpop.f32.mrf.mxu0
        %v1210 = vpop.f32.mrf.mxu0
        %v1211 = vadd.f32 0.0, %v1210
        %v1212 = vpop.f32.mrf.mxu0
        %1213 = vdwg.mxu0
        %v1238 = vunpack.c.l.b16 %v1038
        %v1239 = vunpack.c.l.b16 %v1039
        %v1240 = vunpack.c.l.b16 %v1040
        %v1241 = vunpack.c.l.b16 %v1041
        %v1242 = vunpack.c.l.b16 %v1042
        %v1243 = vunpack.c.l.b16 %v1043
        %v1244 = vunpack.c.l.b16 %v1044
        %v1245 = vunpack.c.l.b16 %v1045
        %v1246 = vunpack.c.l.b16 %v1046
        %v1247 = vunpack.c.l.b16 %v1047
        %v1248 = vunpack.c.l.b16 %v1048
        %v1249 = vunpack.c.l.b16 %v1049
        %v1250 = vunpack.c.l.b16 %v1050
        %v1251 = vunpack.c.l.b16 %v1051
        %v1252 = vunpack.c.l.b16 %v1052
        %v1253 = vunpack.c.l.b16 %v1053
        %v1254 = vunpack.c.l.b16 %v1054
        %v1255 = vunpack.c.l.b16 %v1055
        %v1256 = vunpack.c.l.b16 %v1056
        %v1257 = vunpack.c.l.b16 %v1057
        %v1258 = vunpack.c.l.b16 %v1058
        %v1259 = vunpack.c.l.b16 %v1059
        %v1260 = vunpack.c.l.b16 %v1060
        %v1261 = vunpack.c.l.b16 %v1061
        %v1262 = vpack.c.b16 %v1239, %v1238
        %v1263 = vpack.c.b16 %v1241, %v1240
        %v1264 = vpack.c.b16 %v1243, %v1242
        %v1265 = vpack.c.b16 %v1245, %v1244
        %v1266 = vpack.c.b16 %v1247, %v1246
        %v1267 = vpack.c.b16 %v1249, %v1248
        %v1268 = vpack.c.b16 %v1251, %v1250
        %v1269 = vpack.c.b16 %v1253, %v1252
        %v1270 = vpack.c.b16 %v1255, %v1254
        %v1271 = vpack.c.b16 %v1257, %v1256
        %v1272 = vpack.c.b16 %v1259, %v1258
        %v1273 = vpack.c.b16 %v1261, %v1260
        %v1287 = vsel %vm1169, %v973, 0
        %1289 = vmatprep.subr.bf16.mxu0 0
        %1290 = vmatpush1.bf16.msra.mxu0 %v1269
        %1291 = vmatprep.subr.bf16.mxu0 0
        %1292 = vmatpush1.bf16.msra.mxu0 %v1268
        %1293 = vmatprep.subr.bf16.mxu0 0
        %1294 = vmatpush1.bf16.msra.mxu0 %v1267
        %1295 = vmatprep.subr.bf16.mxu0 0
        %1296 = vmatpush1.bf16.msra.mxu0 %v1266
        %1297 = vmatprep.subr.bf16.mxu0 0
        %1298 = vmatpush1.bf16.msra.mxu0 %v1265
        %1299 = vmatprep.subr.bf16.mxu0 0
        %1300 = vmatpush1.bf16.msra.mxu0 %v1264
        %1301 = vmatprep.subr.bf16.mxu0 0
        %1302 = vmatpush1.bf16.msra.mxu0 %v1263
        %1303 = vmatprep.subr.bf16.mxu0 0
        %1304 = vmatpush1.bf16.msra.mxu0 %v1262
        %1305 = vmatprep.subr.bf16.mxu0 0
        %1306 = vmatpush2.bf16.msra.mxu0 0
        %1307 = vmatprep.subr.bf16.mxu0 0
        %1308 = vmatpush2.bf16.msra.mxu0 0
        %1309 = vmatprep.subr.bf16.mxu0 0
        %1310 = vmatpush2.bf16.msra.mxu0 0
        %1311 = vmatprep.subr.bf16.mxu0 0
        %1312 = vmatpush2.bf16.msra.mxu0 0
        %1313 = vmatprep.subr.bf16.mxu0 0
        %1314 = vmatpush2.bf16.msra.mxu0 %v1273
        %1315 = vmatprep.subr.bf16.mxu0 0
        %1316 = vmatpush2.bf16.msra.mxu0 %v1272
        %1317 = vmatprep.subr.bf16.mxu0 0
        %1318 = vmatpush2.bf16.msra.mxu0 %v1271
        %1319 = vmatprep.subr.bf16.mxu0 0
        %1320 = vmatpush2.bf16.msra.mxu0 %v1270
        %1321 = vmatprep.mubr.bf16.mxu0 %v1287
        %1322 = vmatmul.mubr.bf16.gmra.mxu0 %v972
        %v1323 = vpop.f32.mrf.mxu0
        %v1324 = vadd.f32 %v1208, %v1323
        %v1325 = vpop.f32.mrf.mxu0
        %v1326 = vpop.f32.mrf.mxu0
        %v1327 = vadd.f32 %v1211, %v1326
        %v1328 = vpop.f32.mrf.mxu0
        %1329 = vdwg.mxu0
        %v1330 = vld [vmem:[#allocation2] sm:$0xee]
        %v1331 = vld [vmem:[#allocation2 + $0x8] sm:$0xff]
        %v1332 = vld [vmem:[#allocation2 + $0x10] sm:$0x11]
        %s1333 = scalar_lea.vmem %s2, 192
        %v1334 = vld [vmem:[%s1333] sm:$0xf]
        %v1335 = vld [vmem:[%s1333 + $0x4] sm:$0xf]
        %v1336 = vld [vmem:[%s1333 + $0x8] sm:$0xf]
        %v1337 = vld [vmem:[%s1333 + $0xc] sm:$0xf]
        %v1338 = vld [vmem:[%s1333 + $0x10] sm:$0xf]
        %v1339 = vld [vmem:[%s1333 + $0x14] sm:$0xf]
        %v1340 = vld [vmem:[%s1333 + $0x18] sm:$0xf]
        %v1341 = vld [vmem:[%s1333 + $0x1c] sm:$0xf]
        %v1342 = vld [vmem:[%s1333 + $0x20] sm:$0xf]
        %v1343 = vld [vmem:[%s1333 + $0x24] sm:$0xf]
        %v1344 = vld [vmem:[%s1333 + $0x28] sm:$0xf]
        %v1345 = vld [vmem:[%s1333 + $0x2c] sm:$0xf]
        %v1346 = vld [vmem:[%s1333 + $0x30] sm:$0xf]
        %v1347 = vld [vmem:[%s1333 + $0x34] sm:$0xf]
        %v1348 = vld [vmem:[%s1333 + $0x38] sm:$0xf]
        %v1349 = vld [vmem:[%s1333 + $0x3c] sm:$0xf]
        %v1350 = vld [vmem:[%s1333 + $0x40] sm:$0xf]
        %v1351 = vld [vmem:[%s1333 + $0x44] sm:$0xf]
        %v1352 = vld [vmem:[%s1333 + $0x48] sm:$0xf]
        %v1353 = vld [vmem:[%s1333 + $0x4c] sm:$0xf]
        %v1354 = vld [vmem:[%s1333 + $0x50] sm:$0xf]
        %v1355 = vld [vmem:[%s1333 + $0x54] sm:$0xf]
        %v1356 = vld [vmem:[%s1333 + $0x58] sm:$0xf]
        %v1357 = vld [vmem:[%s1333 + $0x5c] sm:$0xf]
        %v1361 = vunpack.c.l.b16 %v1330
        %v1362 = vunpack.c.h.b16 %v1330
        %v1363 = vunpack.c.l.b16 %v1331
        %v1364 = vunpack.c.h.b16 %v1331
        %v1365 = vunpack.c.l.b16 %v1332
        %v1366 = vunpack.c.h.b16 %v1332
        %v1367 = vpack.c.b16 %v1363, %v1361
        %v1368 = vpack.c.b16 %v1364, %v1362
        %v1369 = vpack.c.b16 %v1365, %v1365
        %v1370 = vpack.c.b16 %v1366, %v1366
        %vm1371 = vcmask 1046528
        %v1372 = vrot.slane %v1367, 1
        %v1373 = vrot.slane %v1369, 1
        %v1374 = vsel %vm1371, %v1372, %v1373
        %v1375 = vrot.slane %v1368, 1
        %v1376 = vrot.slane %v1370, 1
        %v1377 = vsel %vm1371, %v1375, %v1376
        %v1403 = vunpack.c.l.b16 %v1334
        %v1404 = vunpack.c.l.b16 %v1335
        %v1405 = vunpack.c.l.b16 %v1336
        %v1406 = vunpack.c.l.b16 %v1337
        %v1407 = vunpack.c.l.b16 %v1338
        %v1408 = vunpack.c.l.b16 %v1339
        %v1409 = vunpack.c.l.b16 %v1340
        %v1410 = vunpack.c.l.b16 %v1341
        %v1411 = vunpack.c.l.b16 %v1342
        %v1412 = vunpack.c.l.b16 %v1343
        %v1413 = vunpack.c.l.b16 %v1344
        %v1414 = vunpack.c.l.b16 %v1345
        %v1415 = vunpack.c.l.b16 %v1346
        %v1416 = vunpack.c.l.b16 %v1347
        %v1417 = vunpack.c.l.b16 %v1348
        %v1418 = vunpack.c.l.b16 %v1349
        %v1419 = vunpack.c.l.b16 %v1350
        %v1420 = vunpack.c.l.b16 %v1351
        %v1421 = vunpack.c.l.b16 %v1352
        %v1422 = vunpack.c.l.b16 %v1353
        %v1423 = vunpack.c.l.b16 %v1354
        %v1424 = vunpack.c.l.b16 %v1355
        %v1425 = vunpack.c.l.b16 %v1356
        %v1426 = vunpack.c.l.b16 %v1357
        %v1427 = vpack.c.b16 %v1404, %v1403
        %v1428 = vpack.c.b16 %v1406, %v1405
        %v1429 = vpack.c.b16 %v1408, %v1407
        %v1430 = vpack.c.b16 %v1410, %v1409
        %v1431 = vpack.c.b16 %v1412, %v1411
        %v1432 = vpack.c.b16 %v1414, %v1413
        %v1433 = vpack.c.b16 %v1416, %v1415
        %v1434 = vpack.c.b16 %v1418, %v1417
        %v1435 = vpack.c.b16 %v1420, %v1419
        %v1436 = vpack.c.b16 %v1422, %v1421
        %v1437 = vpack.c.b16 %v1424, %v1423
        %v1438 = vpack.c.b16 %v1426, %v1425
        %v1452 = vsel %vm1169, %v1377, 0
        %1454 = vmatprep.subr.bf16.mxu0 0
        %1455 = vmatpush1.bf16.msra.mxu0 %v1434
        %1456 = vmatprep.subr.bf16.mxu0 0
        %1457 = vmatpush1.bf16.msra.mxu0 %v1433
        %1458 = vmatprep.subr.bf16.mxu0 0
        %1459 = vmatpush1.bf16.msra.mxu0 %v1432
        %1460 = vmatprep.subr.bf16.mxu0 0
        %1461 = vmatpush1.bf16.msra.mxu0 %v1431
        %1462 = vmatprep.subr.bf16.mxu0 0
        %1463 = vmatpush1.bf16.msra.mxu0 %v1430
        %1464 = vmatprep.subr.bf16.mxu0 0
        %1465 = vmatpush1.bf16.msra.mxu0 %v1429
        %1466 = vmatprep.subr.bf16.mxu0 0
        %1467 = vmatpush1.bf16.msra.mxu0 %v1428
        %1468 = vmatprep.subr.bf16.mxu0 0
        %1469 = vmatpush1.bf16.msra.mxu0 %v1427
        %1470 = vmatprep.subr.bf16.mxu0 0
        %1471 = vmatpush2.bf16.msra.mxu0 0
        %1472 = vmatprep.subr.bf16.mxu0 0
        %1473 = vmatpush2.bf16.msra.mxu0 0
        %1474 = vmatprep.subr.bf16.mxu0 0
        %1475 = vmatpush2.bf16.msra.mxu0 0
        %1476 = vmatprep.subr.bf16.mxu0 0
        %1477 = vmatpush2.bf16.msra.mxu0 0
        %1478 = vmatprep.subr.bf16.mxu0 0
        %1479 = vmatpush2.bf16.msra.mxu0 %v1438
        %1480 = vmatprep.subr.bf16.mxu0 0
        %1481 = vmatpush2.bf16.msra.mxu0 %v1437
        %1482 = vmatprep.subr.bf16.mxu0 0
        %1483 = vmatpush2.bf16.msra.mxu0 %v1436
        %1484 = vmatprep.subr.bf16.mxu0 0
        %1485 = vmatpush2.bf16.msra.mxu0 %v1435
        %1486 = vmatprep.mubr.bf16.mxu0 %v1452
        %1487 = vmatmul.mubr.bf16.gmra.mxu0 %v1374
        %v1488 = vpop.f32.mrf.mxu0
        %v1489 = vadd.f32 0.0, %v1488
        %v1490 = vpop.f32.mrf.mxu0
        %v1491 = vpop.f32.mrf.mxu0
        %v1492 = vadd.f32 0.0, %v1491
        %v1493 = vpop.f32.mrf.mxu0
        %1494 = vdwg.mxu0
        %v1495 = vadd.f32 %v1324, %v1489
        %v1496 = vadd.f32 %v1327, %v1492
        %v1497 = vadd.f32 %v1495, %v237
        %v1498 = vadd.f32 %v1496, %v237
        %v1499 = vmax.f32 %v1497, 0.0
        %v1500 = vmax.f32 %v1498, 0.0
        %v1501 = vmul.f32 %v1499, %v242
        %v1502 = vmul.f32 %v1500, %v242
        %v1503 = vsel %vm1169, %v1501, 0.0
        %v1504 = vsel %vm1169, %v1502, 0.0
        %v1505 = vadd.f32 %v1503, %v1504
        %v1506 = vrot.slane %v1505, 4
        %v1507 = vadd.f32 %v1505, %v1506
        %v1508 = vrot.slane %v1507, 2
        %v1509 = vadd.f32 %v1507, %v1508
        %v1510 = vrot.slane %v1509, 1
        %v1511 = vadd.f32 %v1509, %v1510
        %v1512 = vsel %vm1169, %v1511, 0.0
        %1513 = vadd.xlane.f32.xlu0 %v1512
        %v1514 = vpop.xlane.xlu0 %1513
        %v1515 = vmul.f32 %v1514, 0.00390625
        %v1516 = vadd.f32 %v1515, %v243
        %v1517 = vmax.f32 %v1516, 0.0
        %1519 = vset.pattern.permute.xlu0 0
        %1520 = vperm.xlu0 %1519, %v1517
        %v1521 = vpop.permute.xlu0 %1520
        %v1523 = vmul.f32 %v1521, %v244
        %v1524 = vadd.f32 %v1523, %v245
        %v1525 = vadd.f32 %v1524, 3.0
        %v1526 = vmax.f32 %v1525, 0.0
        %v1527 = vmin.f32 %v1526, 6.0
        %v1528 = vmul.f32 %v1527, 0.16666667
        %v1529 = vmul.f32 %v1499, %v1528
        %v1530 = vmul.f32 %v1500, %v1528
        %v1531 = vpack.c.bf16 %v1530, %v1529
        %v1532 = vld [vmem:[%s3] sm:$0xff]
        %v1533 = vld [vmem:[%s3 + $0x8] sm:$0xff]
        %v1534 = vld [vmem:[%s3 + $0x10] sm:$0xff]
        %v1535 = vld [vmem:[%s3 + $0x18] sm:$0xff]
        %v1536 = vld [vmem:[%s3 + $0x20] sm:$0xff]
        %v1537 = vld [vmem:[%s3 + $0x28] sm:$0xff]
        %v1538 = vld [vmem:[%s3 + $0x30] sm:$0xff]
        %v1539 = vld [vmem:[%s3 + $0x38] sm:$0xff]
        %v1540 = vld [vmem:[%s3 + $0x40] sm:$0xff]
        %v1541 = vld [vmem:[%s3 + $0x48] sm:$0xff]
        %v1542 = vld [vmem:[%s3 + $0x50] sm:$0xff]
        %v1543 = vld [vmem:[%s3 + $0x58] sm:$0xff]
        %v1544 = vld [vmem:[%s3 + $0x60] sm:$0xff]
        %v1545 = vld [vmem:[%s3 + $0x68] sm:$0xff]
        %v1546 = vld [vmem:[%s3 + $0x70] sm:$0xff]
        %v1547 = vld [vmem:[%s3 + $0x78] sm:$0xff]
        %v1548 = vld [vmem:[%s3 + $0x80] sm:$0xff]
        %v1549 = vld [vmem:[%s3 + $0x88] sm:$0xff]
        %v1550 = vld [vmem:[%s3 + $0x90] sm:$0xff]
        %v1551 = vld [vmem:[%s3 + $0x98] sm:$0xff]
        %v1552 = vld [vmem:[%s3 + $0xa0] sm:$0xff]
        %v1553 = vld [vmem:[%s3 + $0xa8] sm:$0xff]
        %v1554 = vld [vmem:[%s3 + $0xb0] sm:$0xff]
        %v1555 = vld [vmem:[%s3 + $0xb8] sm:$0xff]
        %v1557 = vlaneseq
        %v1558 = vshrl.u32 %v1557, 7
        %v1559 = vsub.s32 0, %v1558
        %v1560 = vrot.slane %v241, %v1559
        %v1561 = vlaneseq
        %v1562 = vshrl.u32 %v1561, 7
        %v1563 = vsub.s32 1, %v1562
        %v1564 = vrot.slane %v241, %v1563
        %v1565 = vlaneseq
        %v1566 = vshrl.u32 %v1565, 7
        %v1567 = vsub.s32 2, %v1566
        %v1568 = vrot.slane %v241, %v1567
        %v1569 = vlaneseq
        %v1570 = vshrl.u32 %v1569, 7
        %v1571 = vsub.s32 3, %v1570
        %v1572 = vrot.slane %v241, %v1571
        %v1573 = vlaneseq
        %v1574 = vshrl.u32 %v1573, 7
        %v1575 = vsub.s32 4, %v1574
        %v1576 = vrot.slane %v241, %v1575
        %v1577 = vlaneseq
        %v1578 = vshrl.u32 %v1577, 7
        %v1579 = vsub.s32 5, %v1578
        %v1580 = vrot.slane %v241, %v1579
        %v1611 = vunpack.c.l.b16 %v1532
        %v1612 = vunpack.c.h.b16 %v1532
        %v1613 = vunpack.c.l.b16 %v1533
        %v1614 = vunpack.c.h.b16 %v1533
        %v1615 = vunpack.c.l.b16 %v1534
        %v1616 = vunpack.c.h.b16 %v1534
        %v1617 = vunpack.c.l.b16 %v1535
        %v1618 = vunpack.c.h.b16 %v1535
        %v1619 = vunpack.c.l.b16 %v1536
        %v1620 = vunpack.c.h.b16 %v1536
        %v1621 = vunpack.c.l.b16 %v1537
        %v1622 = vunpack.c.h.b16 %v1537
        %v1623 = vunpack.c.l.b16 %v1538
        %v1624 = vunpack.c.h.b16 %v1538
        %v1625 = vunpack.c.l.b16 %v1539
        %v1626 = vunpack.c.h.b16 %v1539
        %v1627 = vunpack.c.l.b16 %v1540
        %v1628 = vunpack.c.h.b16 %v1540
        %v1629 = vunpack.c.l.b16 %v1541
        %v1630 = vunpack.c.h.b16 %v1541
        %v1631 = vunpack.c.l.b16 %v1542
        %v1632 = vunpack.c.h.b16 %v1542
        %v1633 = vunpack.c.l.b16 %v1543
        %v1634 = vunpack.c.h.b16 %v1543
        %v1635 = vunpack.c.l.b16 %v1544
        %v1636 = vunpack.c.h.b16 %v1544
        %v1637 = vunpack.c.l.b16 %v1545
        %v1638 = vunpack.c.h.b16 %v1545
        %v1639 = vunpack.c.l.b16 %v1546
        %v1640 = vunpack.c.h.b16 %v1546
        %v1641 = vunpack.c.l.b16 %v1547
        %v1642 = vunpack.c.h.b16 %v1547
        %v1643 = vunpack.c.l.b16 %v1548
        %v1644 = vunpack.c.h.b16 %v1548
        %v1645 = vunpack.c.l.b16 %v1549
        %v1646 = vunpack.c.h.b16 %v1549
        %v1647 = vunpack.c.l.b16 %v1550
        %v1648 = vunpack.c.h.b16 %v1550
        %v1649 = vunpack.c.l.b16 %v1551
        %v1650 = vunpack.c.h.b16 %v1551
        %v1651 = vunpack.c.l.b16 %v1552
        %v1652 = vunpack.c.h.b16 %v1552
        %v1653 = vunpack.c.l.b16 %v1553
        %v1654 = vunpack.c.h.b16 %v1553
        %v1655 = vunpack.c.l.b16 %v1554
        %v1656 = vunpack.c.h.b16 %v1554
        %v1657 = vunpack.c.l.b16 %v1555
        %v1658 = vunpack.c.h.b16 %v1555
        %v1659 = vpack.c.b16 %v1617, %v1611
        %v1660 = vpack.c.b16 %v1618, %v1612
        %v1661 = vpack.c.b16 %v1619, %v1613
        %v1662 = vpack.c.b16 %v1620, %v1614
        %v1663 = vpack.c.b16 %v1621, %v1615
        %v1664 = vpack.c.b16 %v1622, %v1616
        %v1665 = vpack.c.b16 %v1629, %v1623
        %v1666 = vpack.c.b16 %v1630, %v1624
        %v1667 = vpack.c.b16 %v1631, %v1625
        %v1668 = vpack.c.b16 %v1632, %v1626
        %v1669 = vpack.c.b16 %v1633, %v1627
        %v1670 = vpack.c.b16 %v1634, %v1628
        %v1671 = vpack.c.b16 %v1641, %v1635
        %v1672 = vpack.c.b16 %v1642, %v1636
        %v1673 = vpack.c.b16 %v1643, %v1637
        %v1674 = vpack.c.b16 %v1644, %v1638
        %v1675 = vpack.c.b16 %v1645, %v1639
        %v1676 = vpack.c.b16 %v1646, %v1640
        %v1677 = vpack.c.b16 %v1653, %v1647
        %v1678 = vpack.c.b16 %v1654, %v1648
        %v1679 = vpack.c.b16 %v1655, %v1649
        %v1680 = vpack.c.b16 %v1656, %v1650
        %v1681 = vpack.c.b16 %v1657, %v1651
        %v1682 = vpack.c.b16 %v1658, %v1652
        %v1708 = vsel %vm1169, %v1531, 0
        %1710 = vmatprep.subr.bf16.mxu0 0
        %1711 = vmatpush1.bf16.msra.mxu0 0
        %1712 = vmatprep.subr.bf16.mxu0 0
        %1713 = vmatpush1.bf16.msra.mxu0 0
        %1714 = vmatprep.subr.bf16.mxu0 0
        %1715 = vmatpush1.bf16.msra.mxu0 0
        %1716 = vmatprep.subr.bf16.mxu0 0
        %1717 = vmatpush1.bf16.msra.mxu0 0
        %1718 = vmatprep.subr.bf16.mxu0 %v1678
        %1719 = vmatpush1.bf16.msra.mxu0 %v1677
        %1720 = vmatprep.subr.bf16.mxu0 %v1672
        %1721 = vmatpush1.bf16.msra.mxu0 %v1671
        %1722 = vmatprep.subr.bf16.mxu0 %v1666
        %1723 = vmatpush1.bf16.msra.mxu0 %v1665
        %1724 = vmatprep.subr.bf16.mxu0 %v1660
        %1725 = vmatpush1.bf16.msra.mxu0 %v1659
        %1726 = vmatprep.subr.bf16.mxu0 0
        %1727 = vmatpush2.bf16.msra.mxu0 0
        %1728 = vmatprep.subr.bf16.mxu0 0
        %1729 = vmatpush2.bf16.msra.mxu0 0
        %1730 = vmatprep.subr.bf16.mxu0 0
        %1731 = vmatpush2.bf16.msra.mxu0 0
        %1732 = vmatprep.subr.bf16.mxu0 0
        %1733 = vmatpush2.bf16.msra.mxu0 0
        %1734 = vmatprep.subr.bf16.mxu0 0
        %1735 = vmatpush2.bf16.msra.mxu0 0
        %1736 = vmatprep.subr.bf16.mxu0 0
        %1737 = vmatpush2.bf16.msra.mxu0 0
        %1738 = vmatprep.subr.bf16.mxu0 0
        %1739 = vmatpush2.bf16.msra.mxu0 0
        %1740 = vmatprep.subr.bf16.mxu0 0
        %1741 = vmatpush2.bf16.msra.mxu0 0
        %1742 = vmatprep.mubr.bf16.mxu0 0
        %1743 = vmatmul.mubr.bf16.gmra.mxu0 %v1708
        %v1744 = vpop.f32.mrf.mxu0
        %v1745 = vadd.f32 %v1560, %v1744
        %v1746 = vpop.f32.mrf.mxu0
        %v1747 = vadd.f32 %v1564, %v1746
        %v1748 = vpop.f32.mrf.mxu0
        %v1749 = vadd.f32 %v1560, %v1748
        %v1750 = vpop.f32.mrf.mxu0
        %v1751 = vadd.f32 %v1564, %v1750
        %1752 = vdwg.mxu0
        %1753 = vmatprep.subr.bf16.mxu0 0
        %1754 = vmatpush1.bf16.msra.mxu0 0
        %1755 = vmatprep.subr.bf16.mxu0 0
        %1756 = vmatpush1.bf16.msra.mxu0 0
        %1757 = vmatprep.subr.bf16.mxu0 0
        %1758 = vmatpush1.bf16.msra.mxu0 0
        %1759 = vmatprep.subr.bf16.mxu0 0
        %1760 = vmatpush1.bf16.msra.mxu0 0
        %1761 = vmatprep.subr.bf16.mxu0 %v1680
        %1762 = vmatpush1.bf16.msra.mxu0 %v1679
        %1763 = vmatprep.subr.bf16.mxu0 %v1674
        %1764 = vmatpush1.bf16.msra.mxu0 %v1673
        %1765 = vmatprep.subr.bf16.mxu0 %v1668
        %1766 = vmatpush1.bf16.msra.mxu0 %v1667
        %1767 = vmatprep.subr.bf16.mxu0 %v1662
        %1768 = vmatpush1.bf16.msra.mxu0 %v1661
        %1769 = vmatprep.subr.bf16.mxu0 0
        %1770 = vmatpush2.bf16.msra.mxu0 0
        %1771 = vmatprep.subr.bf16.mxu0 0
        %1772 = vmatpush2.bf16.msra.mxu0 0
        %1773 = vmatprep.subr.bf16.mxu0 0
        %1774 = vmatpush2.bf16.msra.mxu0 0
        %1775 = vmatprep.subr.bf16.mxu0 0
        %1776 = vmatpush2.bf16.msra.mxu0 0
        %1777 = vmatprep.subr.bf16.mxu0 0
        %1778 = vmatpush2.bf16.msra.mxu0 0
        %1779 = vmatprep.subr.bf16.mxu0 0
        %1780 = vmatpush2.bf16.msra.mxu0 0
        %1781 = vmatprep.subr.bf16.mxu0 0
        %1782 = vmatpush2.bf16.msra.mxu0 0
        %1783 = vmatprep.subr.bf16.mxu0 0
        %1784 = vmatpush2.bf16.msra.mxu0 0
        %1785 = vmatprep.mubr.bf16.mxu0 0
        %1786 = vmatmul.mubr.bf16.gmra.mxu0 %v1708
        %v1787 = vpop.f32.mrf.mxu0
        %v1788 = vadd.f32 %v1568, %v1787
        %v1789 = vpop.f32.mrf.mxu0
        %v1790 = vadd.f32 %v1572, %v1789
        %v1791 = vpop.f32.mrf.mxu0
        %v1792 = vadd.f32 %v1568, %v1791
        %v1793 = vpop.f32.mrf.mxu0
        %v1794 = vadd.f32 %v1572, %v1793
        %1795 = vdwg.mxu0
        %1796 = vmatprep.subr.bf16.mxu0 0
        %1797 = vmatpush1.bf16.msra.mxu0 0
        %1798 = vmatprep.subr.bf16.mxu0 0
        %1799 = vmatpush1.bf16.msra.mxu0 0
        %1800 = vmatprep.subr.bf16.mxu0 0
        %1801 = vmatpush1.bf16.msra.mxu0 0
        %1802 = vmatprep.subr.bf16.mxu0 0
        %1803 = vmatpush1.bf16.msra.mxu0 0
        %1804 = vmatprep.subr.bf16.mxu0 %v1682
        %1805 = vmatpush1.bf16.msra.mxu0 %v1681
        %1806 = vmatprep.subr.bf16.mxu0 %v1676
        %1807 = vmatpush1.bf16.msra.mxu0 %v1675
        %1808 = vmatprep.subr.bf16.mxu0 %v1670
        %1809 = vmatpush1.bf16.msra.mxu0 %v1669
        %1810 = vmatprep.subr.bf16.mxu0 %v1664
        %1811 = vmatpush1.bf16.msra.mxu0 %v1663
        %1812 = vmatprep.subr.bf16.mxu0 0
        %1813 = vmatpush2.bf16.msra.mxu0 0
        %1814 = vmatprep.subr.bf16.mxu0 0
        %1815 = vmatpush2.bf16.msra.mxu0 0
        %1816 = vmatprep.subr.bf16.mxu0 0
        %1817 = vmatpush2.bf16.msra.mxu0 0
        %1818 = vmatprep.subr.bf16.mxu0 0
        %1819 = vmatpush2.bf16.msra.mxu0 0
        %1820 = vmatprep.subr.bf16.mxu0 0
        %1821 = vmatpush2.bf16.msra.mxu0 0
        %1822 = vmatprep.subr.bf16.mxu0 0
        %1823 = vmatpush2.bf16.msra.mxu0 0
        %1824 = vmatprep.subr.bf16.mxu0 0
        %1825 = vmatpush2.bf16.msra.mxu0 0
        %1826 = vmatprep.subr.bf16.mxu0 0
        %1827 = vmatpush2.bf16.msra.mxu0 0
        %1828 = vmatprep.mubr.bf16.mxu0 0
        %1829 = vmatmul.mubr.bf16.gmra.mxu0 %v1708
        %v1830 = vpop.f32.mrf.mxu0
        %v1831 = vadd.f32 %v1576, %v1830
        %v1832 = vpop.f32.mrf.mxu0
        %v1833 = vadd.f32 %v1580, %v1832
        %v1834 = vpop.f32.mrf.mxu0
        %v1835 = vadd.f32 %v1576, %v1834
        %v1836 = vpop.f32.mrf.mxu0
        %v1837 = vadd.f32 %v1580, %v1836
        %1838 = vdwg.mxu0
        %v1839 = vadd.f32 %v1745, %v224
        %v1840 = vadd.f32 %v1747, %v225
        %v1841 = vadd.f32 %v1788, %v226
        %v1842 = vadd.f32 %v1790, %v227
        %v1843 = vadd.f32 %v1831, %v228
        %v1844 = vadd.f32 %v1833, %v229
        %v1845 = vadd.f32 %v1749, %v230
        %v1846 = vadd.f32 %v1751, %v231
        %v1847 = vadd.f32 %v1792, %v232
        %v1848 = vadd.f32 %v1794, %v233
        %v1849 = vadd.f32 %v1835, %v234
        %v1850 = vadd.f32 %v1837, %v235
        %v1851 = vmax.f32 %v1839, 0.0
        %v1852 = vmax.f32 %v1840, 0.0
        %v1853 = vmax.f32 %v1841, 0.0
        %v1854 = vmax.f32 %v1842, 0.0
        %v1855 = vmax.f32 %v1843, 0.0
        %v1856 = vmax.f32 %v1844, 0.0
        %v1857 = vmax.f32 %v1845, 0.0
        %v1858 = vmax.f32 %v1846, 0.0
        %v1859 = vmax.f32 %v1847, 0.0
        %v1860 = vmax.f32 %v1848, 0.0
        %v1861 = vmax.f32 %v1849, 0.0
        %v1862 = vmax.f32 %v1850, 0.0
        %1863 = vst [vmem:[%s217] sm:$0xff] %v1851
        %1864 = vst [vmem:[%s217 + $0x8] sm:$0xff] %v1852
        %1865 = vst [vmem:[%s217 + $0x10] sm:$0xff] %v1853
        %1866 = vst [vmem:[%s217 + $0x18] sm:$0xff] %v1854
        %1867 = vst [vmem:[%s217 + $0x20] sm:$0xff] %v1855
        %1868 = vst [vmem:[%s217 + $0x28] sm:$0xff] %v1856
        %1869 = vst [vmem:[%s217 + $0x30] sm:$0xff] %v1857
        %1870 = vst [vmem:[%s217 + $0x38] sm:$0xff] %v1858
        %1871 = vst [vmem:[%s217 + $0x40] sm:$0xff] %v1859
        %1872 = vst [vmem:[%s217 + $0x48] sm:$0xff] %v1860
        %1873 = vst [vmem:[%s217 + $0x50] sm:$0xff] %v1861
        %1874 = vst [vmem:[%s217 + $0x58] sm:$0xff] %v1862
        %s1875 = sand.u32 %s137, 1
        %s1876 = scalar_lea.sflag [#allocation4], %s1875
        %s1877 = sand.u32 %s137, 1
        %s1878 = smul.addr %s1877, 96
        %s1879 = scalar_lea.vmem [#allocation3], %s1878
        // Predicated region
        $region41: #{tpu_custom_call.1} parent=39 // pred_check
          %p1880 = pneg %p147
        $region42: #{tpu_custom_call.1} parent=39 // pred_check_branch
          %1882 = sbr.rel (%p1880) target = $region44
        $region43: #{tpu_custom_call.1} parent=39 // pred_region
          %s1884 = ssub.s32 1536, 1536
          %1885 = vsyncadd %s1876, %s1884
          %s1886 = smul.addr %s19, 12
          %s1887 = smul.addr %s1886, 128
          %s1888 = scalar_lea.hbm %s5, %s1887
          %s1889 = sshll.u32 %s1879, 4
          %s1890 = int_to_ptr.vmem [resolvable:$true] %s1889
          %1895 = dma.vmem_to_hbm [thread:$0]  %s1890, 1536, %s1888, %s1876, 768, 768, 48
        $region44: #{tpu_custom_call.1} parent=39 // pred_fallthru
          _
      $region40: #{tpu_custom_call.1} parent=5 // pred_fallthru
        _
      %p1896 = scmp.le.s32.totalorder 2, %s14
      // Predicated region
      $region45: #{tpu_custom_call.1} parent=5 // pred_check
        %p1897 = pneg %p1896
      $region46: #{tpu_custom_call.1} parent=5 // pred_check_branch
        %1899 = sbr.rel (%p1897) target = $region48
      $region47: #{tpu_custom_call.1} parent=5 // pred_region
        %s1900 = ssub.s32 %s14, 2
        // Predicated region
        $region49: #{tpu_custom_call.1} parent=47 // pred_check
          %p1901 = pneg %p153
        $region50: #{tpu_custom_call.1} parent=47 // pred_check_branch
          %1903 = sbr.rel (%p1901) target = $region52
        $region51: #{tpu_custom_call.1} parent=47 // pred_region
          %s1904 = sand.u32 %s138, 1
          %s1905 = scalar_lea.sflag [#allocation4], %s1904
          %s1906 = sand.u32 %s138, 1
          %s1907 = smul.addr %s1906, 96
          %s1908 = scalar_lea.vmem [#allocation3], %s1907
          %1909 = dma.done %s1905, 1536
        $region52: #{tpu_custom_call.1} parent=47 // pred_fallthru
          _
      $region48: #{tpu_custom_call.1} parent=5 // pred_fallthru
        _
    $region6: #{tpu_custom_call.1} parent=1 // loop_footer
      %s18 = sadd.s32 1, %s14
    $region7: #{tpu_custom_call.1} parent=1 // loop_footer_branch
      %13 = sbr.rel target = $region3
    $region8: #{tpu_custom_call.1} parent=1 // loop_exit
      _
    %1910 = vsyncpa [#allocation4], 1
    %s1911 = scalar_lea.sflag [#allocation4], 1
    %1912 = vsyncpa %s1911, 1

</llo_original>
